<compile_context>
chip_gen: v6e
topology: v6e:2x2x1
jax: 0.10.0
libtpu: 0.0.40
codegen_flags: <defaults>
</compile_context>

<pallas_src>
import functools
import math

import jax
import jax.numpy as jnp
from jax import lax
from jax.experimental import pallas as pl
from jax.experimental.pallas import tpu as pltpu

LN_EPS = 1e-5      # PyTorch LayerNorm default eps
LANE = 128


def _round_up(x, m):
    return (x + m - 1) // m * m


def aligner_kernel(x_ref, w_ref, p_ref, o_ref, *, seq_len, hidden, ksize):
    """Processes Bb batch elements per grid step.

    x_ref : (Bb, Tp, Hp)   compute dtype (bf16/f32); rows >= seq_len and lanes
                           >= hidden are zero-padded by the wrapper.
    w_ref : (K*Hp, Hp)     folded conv weight, rows [k*Hp, (k+1)*Hp) = tap k.
    p_ref : (8, Hp)        packed f32 parameters:
                             0: conv bias  1: ln1 gamma  2: ln1 beta
                             3: ln2 gamma  4: ln2 beta   5: linear weight row
                             6: linear bias (replicated)  7: unused (zeros)
    o_ref : (Bb, 1, Tp)    lane-dense output slab (f32).
    """
    Bb, Tp, Hp = x_ref.shape
    K = ksize
    pad = (K - 1) // 2
    cdt = x_ref.dtype                       # matmul operand dtype (bf16 or f32)

    # (1, Tp, 1) f32 row masks: mask_k[t] = 1 iff source row t + k - pad lies
    # inside the real sequence [0, seq_len).  Broadcast over batch and lanes.
    t_idx = lax.broadcasted_iota(jnp.int32, (1, Tp, 1), 1)
    row_masks = [
        ((t_idx >= (pad - k)) & (t_idx < (seq_len + pad - k))).astype(jnp.float32)
        for k in range(K)
    ]

    bconv = p_ref[0:1, :].reshape(1, 1, Hp)
    g1 = p_ref[1:2, :].reshape(1, 1, Hp)
    b1 = p_ref[2:3, :].reshape(1, 1, Hp)
    g2 = p_ref[3:4, :].reshape(1, 1, Hp)
    b2 = p_ref[4:5, :].reshape(1, 1, Hp)
    wlin = p_ref[5:6, :].reshape(1, 1, Hp).astype(cdt)
    blin = p_ref[6:7, 0:1]                                   # (1, 1) f32

    def conv_same(y_cdt):
        """'same' Conv1d over time.  K matmuls on the unshifted (cdt) input;
        the f32 partial outputs are rolled into place and out-of-range source
        rows are zeroed with the (1,Tp,1) row masks (zero 'same' padding and
        isolation of the garbage rows t >= seq_len before the second conv)."""
        y2d = y_cdt.reshape(Bb * Tp, Hp)
        acc = None
        for k in range(K):
            wk = w_ref[k * Hp:(k + 1) * Hp, :]               # (Hp, Hp), tile-aligned
            part = jnp.dot(y2d, wk, preferred_element_type=jnp.float32)
            part = part.reshape(Bb, Tp, Hp)
            shift = (pad - k) % Tp
            if shift:
                part = pltpu.roll(part, shift=shift, axis=1)
            term = part * row_masks[k]
            acc = term if acc is None else acc + term
        return acc + bconv

    def ln_relu(y3, gamma, beta):
        # y3 is f32 and exactly 0 in the padded lanes (weight columns / bias
        # zero-padded), so mean/var over 1/hidden need no lane mask.  gamma and
        # beta are 0 in padded lanes, keeping those lanes 0 after affine+ReLU.
        inv_h = 1.0 / hidden
        mu = jnp.sum(y3, axis=-1, keepdims=True) * inv_h
        ex2 = jnp.sum(y3 * y3, axis=-1, keepdims=True) * inv_h
        var = jnp.maximum(ex2 - mu * mu, 0.0)     # E[x^2]-mu^2 in f32
        y = (y3 - mu) * lax.rsqrt(var + LN_EPS)
        y = y * gamma + beta
        return jnp.maximum(y, 0.0).astype(cdt)

    x0 = x_ref[...]                               # (Bb, Tp, Hp), compute dtype
    # conv1 -> LayerNorm1 -> ReLU -> Dropout
    # TODO(synk): Dropout has no inference-time effect; implemented as identity
    # (a training path would need pltpu.prng_* masks).
    y = ln_relu(conv_same(x0), g1, b1)
    # The reference forward applies conv1 AGAIN (conv2 is unused) -> LN2 -> ReLU.
    y = ln_relu(conv_same(y), g2, b2)

    # Final Linear(H -> 1) + ReLU, emitted lane-dense as (Bb, 1, Tp).
    wlin_b = jnp.broadcast_to(wlin, (Bb, 1, Hp))
    out = jnp.einsum('bih,bth->bit', wlin_b, y,
                     preferred_element_type=jnp.float32)
    o_ref[...] = jnp.maximum(out + blin, 0.0).astype(o_ref.dtype)


def _vmem_capacity_bytes():
    try:
        info = pltpu.get_tpu_info()
        cap = int(getattr(info, "vmem_capacity_bytes", 0))
        if cap > 0:
            return cap
    except Exception:
        pass
    return 0


def aligner_pallas(x, params, *, ksize, compute_dtype=jnp.bfloat16,
                   batch_block=None, vmem_limit_bytes=None):
    """x: (B, T, H) float32 -> (B, T, 1) float32 (eval-mode forward)."""
    wconv, bconv, g1, b1, g2, b2, wlin, blin = params
    B, T, H = x.shape
    K = ksize
    assert K % 2 == 1, "'same' Conv1d with an even kernel pads asymmetrically"
    # Padded-lane correctness (LayerNorm stats, final dot) relies on these
    # parameters having the exact unpadded shapes; the wrapper zero-pads them.
    assert wconv.shape == (K, H, H)
    for v in (bconv, g1, b1, g2, b2, wlin):
        assert v.shape == (H,)

    Hp = _round_up(H, LANE)                 # hidden on the lane axis
    Tp = _round_up(T, LANE)                 # lane-dense output rows

    # --- generation-aware VMEM limit (v7x: 64 MiB physical; v5e/v6e: 128) ----
    cap = _vmem_capacity_bytes()
    if vmem_limit_bytes is None:
        if cap:
            vmem_limit_bytes = min(int(cap * 0.7), 100 * 1024 * 1024)
        else:
            vmem_limit_bytes = 40 * 1024 * 1024     # safe on every generation
    vmem_limit_bytes = int(vmem_limit_bytes)

    if batch_block is None:
        # Rough per-batch working set: double-buffered cdt x block, one f32
        # partial, the f32 conv accumulator and LayerNorm temporaries.
        per_batch = Tp * Hp * 20
        budget = max(vmem_limit_bytes // 3, 4 * 1024 * 1024)
        Bb = int(max(1, min(32, budget // per_batch, B)))
        if B > 1:
            # v7x megacore: aim for an even grid with >= 2 steps.
            steps = -(-B // Bb)
            steps = max(2, steps + (steps % 2))
            Bb = max(1, -(-B // steps))
        batch_block = Bb
    Bb = int(batch_block)
    steps = -(-B // Bb)
    Bp = steps * Bb

    # TODO(synk): for very large T*H (per-batch working set above the VMEM
    # budget) a sequence-axis grid dimension with a pad-row conv halo is
    # required; not implemented here.

    # ---- parameter / input packing (plain JAX glue, once per call) ----------
    x_p = jnp.pad(x.astype(compute_dtype),
                  ((0, Bp - B), (0, Tp - T), (0, Hp - H)))
    # conv weight layout: (K, H_in, H_out).  A PyTorch Conv1d weight of shape
    # (H_out, H_in, K) maps onto it via w.transpose(2, 1, 0).
    w_p = jnp.pad(wconv.astype(compute_dtype),
                  ((0, 0), (0, Hp - H), (0, Hp - H))).reshape(K * Hp, Hp)

    def row(v):                               # (H,) -> (Hp,) f32, zero padded
        return jnp.pad(jnp.asarray(v, jnp.float32).reshape(-1), (0, Hp - H))

    p_rows = [row(bconv), row(g1), row(b1), row(g2), row(b2), row(wlin),
              jnp.full((Hp,), jnp.asarray(blin, jnp.float32)),
              jnp.zeros((Hp,), jnp.float32)]
    params_p = jnp.stack(p_rows)                            # (8, Hp) f32 slab

    kernel = functools.partial(aligner_kernel, seq_len=T, hidden=H, ksize=K)
    rep = lambda g: (0, 0)

    grid_spec = pltpu.PrefetchScalarGridSpec(
        num_scalar_prefetch=0,
        grid=(steps,),
        in_specs=[
            pl.BlockSpec((Bb, Tp, Hp), lambda g: (g, 0, 0)),   # x
            pl.BlockSpec((K * Hp, Hp), rep),                   # folded conv weight
            pl.BlockSpec((8, Hp), rep),                        # packed params
        ],
        out_specs=pl.BlockSpec((Bb, 1, Tp), lambda g: (g, 0, 0)),
    )

    out = pl.pallas_call(
        kernel,
        out_shape=jax.ShapeDtypeStruct((Bp, 1, Tp), jnp.float32),
        grid_spec=grid_spec,
        compiler_params=pltpu.CompilerParams(
            dimension_semantics=("parallel",),
            vmem_limit_bytes=vmem_limit_bytes),
    )(x_p, w_p, params_p)

    # lane-dense (Bp, 1, Tp) -> PyTorch layout (B, T, 1); wrapper-side plumbing.
    return out[:B, 0, :T][..., None]


def aligner_reference(x, params, *, ksize):
    """Pure-JAX reference with the module's semantics, for verification."""
    wconv, bconv, g1, b1, g2, b2, wlin, blin = params
    B, T, H = x.shape
    pad = (ksize - 1) // 2

    def conv_same(z):
        zp = jnp.pad(z, ((0, 0), (pad, pad), (0, 0)))
        out = sum(jnp.einsum('bth,hg->btg', zp[:, k:k + T, :], wconv[k])
                  for k in range(ksize))
        return out + bconv

    def ln_relu(y, g, b):
        mu = jnp.mean(y, axis=-1, keepdims=True)
        var = jnp.mean((y - mu) ** 2, axis=-1, keepdims=True)
        y = (y - mu) / jnp.sqrt(var + LN_EPS) * g + b
        return jnp.maximum(y, 0.0)

    y = ln_relu(conv_same(x), g1, b1)
    y = ln_relu(conv_same(y), g2, b2)        # conv1 reused, matching the module
    out = jnp.einsum('bth,h->bt', y, wlin)[..., None] + blin
    return jnp.maximum(out, 0.0)


def make_params(key, hidden_size, ksize):
    ks = jax.random.split(key, 8)
    H, K = hidden_size, ksize
    conv_scale = 1.0 / math.sqrt(H * K)
    wconv = jax.random.normal(ks[0], (K, H, H), jnp.float32) * conv_scale
    bconv = jax.random.normal(ks[1], (H,), jnp.float32) * conv_scale
    g1 = 1.0 + 0.1 * jax.random.normal(ks[2], (H,), jnp.float32)
    b1 = 0.1 * jax.random.normal(ks[3], (H,), jnp.float32)
    g2 = 1.0 + 0.1 * jax.random.normal(ks[4], (H,), jnp.float32)
    b2 = 0.1 * jax.random.normal(ks[5], (H,), jnp.float32)
    lin_scale = 1.0 / math.sqrt(H)
    wlin = jax.random.normal(ks[6], (H,), jnp.float32) * lin_scale
    blin = jax.random.normal(ks[7], (), jnp.float32) * lin_scale
    return (wconv, bconv, g1, b1, g2, b2, wlin, blin)


if __name__ == "__main__":
    B, T, H, K = 2, 16, 32, 3       # batch, seq, hidden_size, kernel_size
    key = jax.random.PRNGKey(0)
    k_x, k_p = jax.random.split(key)
    x = jax.random.normal(k_x, (B, T, H), jnp.float32)
    params = make_params(k_p, H, K)

    ref = aligner_reference(x, params, ksize=K)

    # Semantic check with f32 matmul operands.
    out_f32 = jax.block_until_ready(
        aligner_pallas(x, params, ksize=K, compute_dtype=jnp.float32))
    assert out_f32.shape == (B, T, 1)
    err = float(jnp.max(jnp.abs(out_f32 - ref)))
    assert jnp.allclose(out_f32, ref, atol=2e-2, rtol=2e-2), f"f32 max err {err}"

    # Production path: bf16 operands, f32 accumulation + f32 LayerNorm.
    # (Note: activations are quantized to bf16 between stages; documented as
    #  the reason for the looser tolerance.)
    out_bf16 = jax.block_until_ready(
        aligner_pallas(x, params, ksize=K, compute_dtype=jnp.bfloat16))
    assert out_bf16.shape == (B, T, 1)
    err = float(jnp.max(jnp.abs(out_bf16 - ref)))
    assert jnp.allclose(out_bf16, ref, atol=1e-1, rtol=1e-1), f"bf16 max err {err}"

    print("KERNEL_OK")
</pallas_src>

<mosaic_0001>
module attributes {stable_mosaic.version = 11 : i64} {
  func.func @aligner_kernel(%arg0: i32, %arg1: memref<1x128x128xf32, #tpu.memory_space<vmem>>, %arg2: memref<384x128xf32, #tpu.memory_space<vmem>>, %arg3: memref<8x128xf32, #tpu.memory_space<vmem>>, %arg4: memref<1x1x128xf32, #tpu.memory_space<vmem>>) attributes {dimension_semantics = [#tpu.dimension_semantics<parallel>], iteration_bounds = array<i64: 2>, scalar_prefetch = 0 : i64, scratch_operands = 0 : i64, tpu.core_type = #tpu.core_type<tc>, window_params = [{transform_indices = @transform_0, window_bounds = array<i64: 1, 128, 128>}, {pipeline_mode = #tpu.pipeline_mode<synchronous>, transform_indices = @transform_1, window_bounds = array<i64: 384, 128>}, {pipeline_mode = #tpu.pipeline_mode<synchronous>, transform_indices = @transform_2, window_bounds = array<i64: 8, 128>}, {transform_indices = @transform_3, window_bounds = array<i64: 1, 1, 128>}]} {
    %0 = tpu.iota {dimensions = array<i32: 1>} : vector<1x128x1xi32>
    %c1_i32 = arith.constant 1 : i32
    %1 = vector.broadcast %c1_i32 : i32 to vector<1x128x1xi32>
    %2 = arith.cmpi sge, %0, %1 : vector<1x128x1xi32>
    %c17_i32 = arith.constant 17 : i32
    %3 = vector.broadcast %c17_i32 : i32 to vector<1x128x1xi32>
    %4 = arith.cmpi slt, %0, %3 : vector<1x128x1xi32>
    %5 = arith.andi %2, %4 : vector<1x128x1xi1>
    %6 = arith.extui %5 : vector<1x128x1xi1> to vector<1x128x1xi32>
    %7 = arith.sitofp %6 : vector<1x128x1xi32> to vector<1x128x1xf32>
    %c0_i32 = arith.constant 0 : i32
    %8 = vector.broadcast %c0_i32 : i32 to vector<1x128x1xi32>
    %9 = arith.cmpi sge, %0, %8 : vector<1x128x1xi32>
    %c16_i32 = arith.constant 16 : i32
    %10 = vector.broadcast %c16_i32 : i32 to vector<1x128x1xi32>
    %11 = arith.cmpi slt, %0, %10 : vector<1x128x1xi32>
    %12 = arith.andi %9, %11 : vector<1x128x1xi1>
    %13 = arith.extui %12 : vector<1x128x1xi1> to vector<1x128x1xi32>
    %14 = arith.sitofp %13 : vector<1x128x1xi32> to vector<1x128x1xf32>
    %c-1_i32 = arith.constant -1 : i32
    %15 = vector.broadcast %c-1_i32 : i32 to vector<1x128x1xi32>
    %16 = arith.cmpi sge, %0, %15 : vector<1x128x1xi32>
    %c15_i32 = arith.constant 15 : i32
    %17 = vector.broadcast %c15_i32 : i32 to vector<1x128x1xi32>
    %18 = arith.cmpi slt, %0, %17 : vector<1x128x1xi32>
    %19 = arith.andi %16, %18 : vector<1x128x1xi1>
    %20 = arith.extui %19 : vector<1x128x1xi1> to vector<1x128x1xi32>
    %21 = arith.sitofp %20 : vector<1x128x1xi32> to vector<1x128x1xf32>
    %c0 = arith.constant 0 : index
    %c0_0 = arith.constant 0 : index
    %22 = vector.load %arg3[%c0, %c0_0] : memref<8x128xf32, #tpu.memory_space<vmem>>, vector<1x128xf32>
    %23 = vector.shape_cast %22 : vector<1x128xf32> to vector<1x1x128xf32>
    %c1 = arith.constant 1 : index
    %c0_1 = arith.constant 0 : index
    %24 = vector.load %arg3[%c1, %c0_1] : memref<8x128xf32, #tpu.memory_space<vmem>>, vector<1x128xf32>
    %25 = vector.shape_cast %24 : vector<1x128xf32> to vector<1x1x128xf32>
    %c2 = arith.constant 2 : index
    %c0_2 = arith.constant 0 : index
    %26 = vector.load %arg3[%c2, %c0_2] : memref<8x128xf32, #tpu.memory_space<vmem>>, vector<1x128xf32>
    %27 = vector.shape_cast %26 : vector<1x128xf32> to vector<1x1x128xf32>
    %c3 = arith.constant 3 : index
    %c0_3 = arith.constant 0 : index
    %28 = vector.load %arg3[%c3, %c0_3] : memref<8x128xf32, #tpu.memory_space<vmem>>, vector<1x128xf32>
    %29 = vector.shape_cast %28 : vector<1x128xf32> to vector<1x1x128xf32>
    %c4 = arith.constant 4 : index
    %c0_4 = arith.constant 0 : index
    %30 = vector.load %arg3[%c4, %c0_4] : memref<8x128xf32, #tpu.memory_space<vmem>>, vector<1x128xf32>
    %31 = vector.shape_cast %30 : vector<1x128xf32> to vector<1x1x128xf32>
    %c5 = arith.constant 5 : index
    %c0_5 = arith.constant 0 : index
    %32 = vector.load %arg3[%c5, %c0_5] : memref<8x128xf32, #tpu.memory_space<vmem>>, vector<1x128xf32>
    %33 = vector.shape_cast %32 : vector<1x128xf32> to vector<1x1x128xf32>
    %c6 = arith.constant 6 : index
    %c0_6 = arith.constant 0 : index
    %34 = vector.load %arg3[%c6, %c0_6] : memref<8x128xf32, #tpu.memory_space<vmem>>, vector<1x1xf32>
    %c0_7 = arith.constant 0 : index
    %c0_8 = arith.constant 0 : index
    %c0_9 = arith.constant 0 : index
    %35 = vector.load %arg1[%c0_7, %c0_8, %c0_9] : memref<1x128x128xf32, #tpu.memory_space<vmem>>, vector<1x128x128xf32>
    %36 = vector.shape_cast %35 : vector<1x128x128xf32> to vector<128x128xf32>
    %c0_10 = arith.constant 0 : index
    %c0_11 = arith.constant 0 : index
    %37 = vector.load %arg2[%c0_10, %c0_11] : memref<384x128xf32, #tpu.memory_space<vmem>>, vector<128x128xf32>
    %cst = arith.constant dense<0.000000e+00> : vector<128x128xf32>
    %38 = tpu.matmul %36, %37, %cst {dimension_numbers = #tpu.dot_dimension_numbers<[1], [0], [0], [1], [0, 0, 1, 1], [], []>} : vector<128x128xf32>, vector<128x128xf32>, vector<128x128xf32> -> vector<128x128xf32>
    %39 = vector.shape_cast %38 : vector<128x128xf32> to vector<1x128x128xf32>
    %c1_i32_12 = arith.constant 1 : i32
    %40 = tpu.dynamic_rotate %39 by %c1_i32_12 dim 1 : vector<1x128x128xf32>, i32 -> vector<1x128x128xf32>
    %41 = vector.broadcast %7 : vector<1x128x1xf32> to vector<1x128x128xf32>
    %42 = arith.mulf %40, %41 : vector<1x128x128xf32>
    %c128 = arith.constant 128 : index
    %c0_13 = arith.constant 0 : index
    %43 = vector.load %arg2[%c128, %c0_13] : memref<384x128xf32, #tpu.memory_space<vmem>>, vector<128x128xf32>
    %cst_14 = arith.constant dense<0.000000e+00> : vector<128x128xf32>
    %44 = tpu.matmul %36, %43, %cst_14 {dimension_numbers = #tpu.dot_dimension_numbers<[1], [0], [0], [1], [0, 0, 1, 1], [], []>} : vector<128x128xf32>, vector<128x128xf32>, vector<128x128xf32> -> vector<128x128xf32>
    %45 = vector.shape_cast %44 : vector<128x128xf32> to vector<1x128x128xf32>
    %46 = vector.broadcast %14 : vector<1x128x1xf32> to vector<1x128x128xf32>
    %47 = arith.mulf %45, %46 : vector<1x128x128xf32>
    %48 = arith.addf %42, %47 : vector<1x128x128xf32>
    %c256 = arith.constant 256 : index
    %c0_15 = arith.constant 0 : index
    %49 = vector.load %arg2[%c256, %c0_15] : memref<384x128xf32, #tpu.memory_space<vmem>>, vector<128x128xf32>
    %cst_16 = arith.constant dense<0.000000e+00> : vector<128x128xf32>
    %50 = tpu.matmul %36, %49, %cst_16 {dimension_numbers = #tpu.dot_dimension_numbers<[1], [0], [0], [1], [0, 0, 1, 1], [], []>} : vector<128x128xf32>, vector<128x128xf32>, vector<128x128xf32> -> vector<128x128xf32>
    %51 = vector.shape_cast %50 : vector<128x128xf32> to vector<1x128x128xf32>
    %c127_i32 = arith.constant 127 : i32
    %52 = tpu.dynamic_rotate %51 by %c127_i32 dim 1 : vector<1x128x128xf32>, i32 -> vector<1x128x128xf32>
    %53 = vector.broadcast %21 : vector<1x128x1xf32> to vector<1x128x128xf32>
    %54 = arith.mulf %52, %53 : vector<1x128x128xf32>
    %55 = arith.addf %48, %54 : vector<1x128x128xf32>
    %56 = vector.broadcast %23 : vector<1x1x128xf32> to vector<1x128x128xf32>
    %57 = arith.addf %55, %56 : vector<1x128x128xf32>
    %cst_17 = arith.constant dense<0.000000e+00> : vector<1x128xf32>
    %58 = vector.multi_reduction <add>, %57, %cst_17 [2] : vector<1x128x128xf32> to vector<1x128xf32>
    %59 = vector.shape_cast %58 : vector<1x128xf32> to vector<1x128x1xf32>
    %cst_18 = arith.constant 3.125000e-02 : f32
    %60 = vector.broadcast %cst_18 : f32 to vector<1x128x1xf32>
    %61 = arith.mulf %59, %60 : vector<1x128x1xf32>
    %62 = arith.mulf %57, %57 : vector<1x128x128xf32>
    %cst_19 = arith.constant dense<0.000000e+00> : vector<1x128xf32>
    %63 = vector.multi_reduction <add>, %62, %cst_19 [2] : vector<1x128x128xf32> to vector<1x128xf32>
    %64 = vector.shape_cast %63 : vector<1x128xf32> to vector<1x128x1xf32>
    %cst_20 = arith.constant 3.125000e-02 : f32
    %65 = vector.broadcast %cst_20 : f32 to vector<1x128x1xf32>
    %66 = arith.mulf %64, %65 : vector<1x128x1xf32>
    %67 = arith.mulf %61, %61 : vector<1x128x1xf32>
    %68 = arith.subf %66, %67 : vector<1x128x1xf32>
    %cst_21 = arith.constant 0.000000e+00 : f32
    %69 = vector.broadcast %cst_21 : f32 to vector<1x128x1xf32>
    %70 = arith.maximumf %68, %69 : vector<1x128x1xf32>
    %71 = vector.broadcast %61 : vector<1x128x1xf32> to vector<1x128x128xf32>
    %72 = arith.subf %57, %71 : vector<1x128x128xf32>
    %cst_22 = arith.constant 9.99999974E-6 : f32
    %73 = vector.broadcast %cst_22 : f32 to vector<1x128x1xf32>
    %74 = arith.addf %70, %73 : vector<1x128x1xf32>
    %75 = math.rsqrt %74 : vector<1x128x1xf32>
    %76 = vector.broadcast %75 : vector<1x128x1xf32> to vector<1x128x128xf32>
    %77 = arith.mulf %72, %76 : vector<1x128x128xf32>
    %78 = vector.broadcast %25 : vector<1x1x128xf32> to vector<1x128x128xf32>
    %79 = arith.mulf %77, %78 : vector<1x128x128xf32>
    %80 = vector.broadcast %27 : vector<1x1x128xf32> to vector<1x128x128xf32>
    %81 = arith.addf %79, %80 : vector<1x128x128xf32>
    %cst_23 = arith.constant 0.000000e+00 : f32
    %82 = vector.broadcast %cst_23 : f32 to vector<1x128x128xf32>
    %83 = arith.maximumf %81, %82 : vector<1x128x128xf32>
    %84 = vector.shape_cast %83 : vector<1x128x128xf32> to vector<128x128xf32>
    %c0_24 = arith.constant 0 : index
    %c0_25 = arith.constant 0 : index
    %85 = vector.load %arg2[%c0_24, %c0_25] : memref<384x128xf32, #tpu.memory_space<vmem>>, vector<128x128xf32>
    %cst_26 = arith.constant dense<0.000000e+00> : vector<128x128xf32>
    %86 = tpu.matmul %84, %85, %cst_26 {dimension_numbers = #tpu.dot_dimension_numbers<[1], [0], [0], [1], [0, 0, 1, 1], [], []>} : vector<128x128xf32>, vector<128x128xf32>, vector<128x128xf32> -> vector<128x128xf32>
    %87 = vector.shape_cast %86 : vector<128x128xf32> to vector<1x128x128xf32>
    %c1_i32_27 = arith.constant 1 : i32
    %88 = tpu.dynamic_rotate %87 by %c1_i32_27 dim 1 : vector<1x128x128xf32>, i32 -> vector<1x128x128xf32>
    %89 = vector.broadcast %7 : vector<1x128x1xf32> to vector<1x128x128xf32>
    %90 = arith.mulf %88, %89 : vector<1x128x128xf32>
    %c128_28 = arith.constant 128 : index
    %c0_29 = arith.constant 0 : index
    %91 = vector.load %arg2[%c128_28, %c0_29] : memref<384x128xf32, #tpu.memory_space<vmem>>, vector<128x128xf32>
    %cst_30 = arith.constant dense<0.000000e+00> : vector<128x128xf32>
    %92 = tpu.matmul %84, %91, %cst_30 {dimension_numbers = #tpu.dot_dimension_numbers<[1], [0], [0], [1], [0, 0, 1, 1], [], []>} : vector<128x128xf32>, vector<128x128xf32>, vector<128x128xf32> -> vector<128x128xf32>
    %93 = vector.shape_cast %92 : vector<128x128xf32> to vector<1x128x128xf32>
    %94 = vector.broadcast %14 : vector<1x128x1xf32> to vector<1x128x128xf32>
    %95 = arith.mulf %93, %94 : vector<1x128x128xf32>
    %96 = arith.addf %90, %95 : vector<1x128x128xf32>
    %c256_31 = arith.constant 256 : index
    %c0_32 = arith.constant 0 : index
    %97 = vector.load %arg2[%c256_31, %c0_32] : memref<384x128xf32, #tpu.memory_space<vmem>>, vector<128x128xf32>
    %cst_33 = arith.constant dense<0.000000e+00> : vector<128x128xf32>
    %98 = tpu.matmul %84, %97, %cst_33 {dimension_numbers = #tpu.dot_dimension_numbers<[1], [0], [0], [1], [0, 0, 1, 1], [], []>} : vector<128x128xf32>, vector<128x128xf32>, vector<128x128xf32> -> vector<128x128xf32>
    %99 = vector.shape_cast %98 : vector<128x128xf32> to vector<1x128x128xf32>
    %c127_i32_34 = arith.constant 127 : i32
    %100 = tpu.dynamic_rotate %99 by %c127_i32_34 dim 1 : vector<1x128x128xf32>, i32 -> vector<1x128x128xf32>
    %101 = vector.broadcast %21 : vector<1x128x1xf32> to vector<1x128x128xf32>
    %102 = arith.mulf %100, %101 : vector<1x128x128xf32>
    %103 = arith.addf %96, %102 : vector<1x128x128xf32>
    %104 = vector.broadcast %23 : vector<1x1x128xf32> to vector<1x128x128xf32>
    %105 = arith.addf %103, %104 : vector<1x128x128xf32>
    %cst_35 = arith.constant dense<0.000000e+00> : vector<1x128xf32>
    %106 = vector.multi_reduction <add>, %105, %cst_35 [2] : vector<1x128x128xf32> to vector<1x128xf32>
    %107 = vector.shape_cast %106 : vector<1x128xf32> to vector<1x128x1xf32>
    %cst_36 = arith.constant 3.125000e-02 : f32
    %108 = vector.broadcast %cst_36 : f32 to vector<1x128x1xf32>
    %109 = arith.mulf %107, %108 : vector<1x128x1xf32>
    %110 = arith.mulf %105, %105 : vector<1x128x128xf32>
    %cst_37 = arith.constant dense<0.000000e+00> : vector<1x128xf32>
    %111 = vector.multi_reduction <add>, %110, %cst_37 [2] : vector<1x128x128xf32> to vector<1x128xf32>
    %112 = vector.shape_cast %111 : vector<1x128xf32> to vector<1x128x1xf32>
    %cst_38 = arith.constant 3.125000e-02 : f32
    %113 = vector.broadcast %cst_38 : f32 to vector<1x128x1xf32>
    %114 = arith.mulf %112, %113 : vector<1x128x1xf32>
    %115 = arith.mulf %109, %109 : vector<1x128x1xf32>
    %116 = arith.subf %114, %115 : vector<1x128x1xf32>
    %cst_39 = arith.constant 0.000000e+00 : f32
    %117 = vector.broadcast %cst_39 : f32 to vector<1x128x1xf32>
    %118 = arith.maximumf %116, %117 : vector<1x128x1xf32>
    %119 = vector.broadcast %109 : vector<1x128x1xf32> to vector<1x128x128xf32>
    %120 = arith.subf %105, %119 : vector<1x128x128xf32>
    %cst_40 = arith.constant 9.99999974E-6 : f32
    %121 = vector.broadcast %cst_40 : f32 to vector<1x128x1xf32>
    %122 = arith.addf %118, %121 : vector<1x128x1xf32>
    %123 = math.rsqrt %122 : vector<1x128x1xf32>
    %124 = vector.broadcast %123 : vector<1x128x1xf32> to vector<1x128x128xf32>
    %125 = arith.mulf %120, %124 : vector<1x128x128xf32>
    %126 = vector.broadcast %29 : vector<1x1x128xf32> to vector<1x128x128xf32>
    %127 = arith.mulf %125, %126 : vector<1x128x128xf32>
    %128 = vector.broadcast %31 : vector<1x1x128xf32> to vector<1x128x128xf32>
    %129 = arith.addf %127, %128 : vector<1x128x128xf32>
    %cst_41 = arith.constant 0.000000e+00 : f32
    %130 = vector.broadcast %cst_41 : f32 to vector<1x128x128xf32>
    %131 = arith.maximumf %129, %130 : vector<1x128x128xf32>
    "tpu.trace_start"() <{level = 10 : i32, message = "bih,bth->bit"}> : () -> ()
    %cst_42 = arith.constant dense<0.000000e+00> : vector<1x1x128xf32>
    %132 = tpu.matmul %33, %131, %cst_42 {dimension_numbers = #tpu.dot_dimension_numbers<[2], [2], [1], [1], [0, 0, 0, 1, 1, 1], [0], [0]>} : vector<1x1x128xf32>, vector<1x128x128xf32>, vector<1x1x128xf32> -> vector<1x1x128xf32>
    "tpu.trace_stop"() : () -> ()
    %133 = vector.shape_cast %34 : vector<1x1xf32> to vector<1x1x1xf32>
    %134 = vector.broadcast %133 : vector<1x1x1xf32> to vector<1x1x128xf32>
    %135 = arith.addf %132, %134 : vector<1x1x128xf32>
    %cst_43 = arith.constant 0.000000e+00 : f32
    %136 = vector.broadcast %cst_43 : f32 to vector<1x1x128xf32>
    %137 = arith.maximumf %135, %136 : vector<1x1x128xf32>
    %c0_44 = arith.constant 0 : index
    %c0_45 = arith.constant 0 : index
    %c0_46 = arith.constant 0 : index
    %138 = vector.load %arg4[%c0_44, %c0_45, %c0_46] : memref<1x1x128xf32, #tpu.memory_space<vmem>>, vector<1x1x128xf32>
    tpu.vector_store %arg4[%c0_44, %c0_45, %c0_46], %137 {strides = array<i32>} : memref<1x1x128xf32, #tpu.memory_space<vmem>>, vector<1x1x128xf32>,
    return
  }
  func.func @transform_0(%arg0: i32) -> (i32, i32, i32) {
    %c0_i32 = arith.constant 0 : i32
    %c0_i32_0 = arith.constant 0 : i32
    %c0_i32_1 = arith.constant 0 : i32
    return %arg0, %c0_i32, %c0_i32_0 : i32, i32, i32
  }
  func.func @transform_1(%arg0: i32) -> (i32, i32) {
    %c0_i32 = arith.constant 0 : i32
    %c0_i32_0 = arith.constant 0 : i32
    %c0_i32_1 = arith.constant 0 : i32
    return %c0_i32, %c0_i32_0 : i32, i32
  }
  func.func @transform_2(%arg0: i32) -> (i32, i32) {
    %c0_i32 = arith.constant 0 : i32
    %c0_i32_0 = arith.constant 0 : i32
    %c0_i32_1 = arith.constant 0 : i32
    return %c0_i32, %c0_i32_0 : i32, i32
  }
  func.func @transform_3(%arg0: i32) -> (i32, i32, i32) {
    %c0_i32 = arith.constant 0 : i32
    %c0_i32_0 = arith.constant 0 : i32
    %c0_i32_1 = arith.constant 0 : i32
    return %arg0, %c0_i32, %c0_i32_0 : i32, i32, i32
  }
}

</mosaic_0001>

<llo_original>
// kernel: tpu_custom_call.1
$region0: #{tpu_custom_call.1}
  #allocation0 [shape = 'u32[]', space=smem, size = 0x4, offset = 0x4, fixed_abs, tag = 'smem constant byte address 0x4 - core index']
  #allocation1 [shape = 'u32[144,128]{1,0:T(1,128)}', space=vmem, size = 0x12000, scoped, tag = 'internal scratch']
  %s0 = inlined_call_operand.hbm [shape: f32[2,128,128], index: 0, kind: input, shape index: {}]
  %s1 = inlined_call_operand.hbm [shape: f32[384,128], index: 1, kind: input, shape index: {}]
  %s2 = inlined_call_operand.hbm [shape: f32[8,128], index: 2, kind: input, shape index: {}]
  %s3 = inlined_call_operand.hbm [shape: f32[2,1,128], index: 3, kind: output, shape index: {}]
  %s4 = sld [smem:[#allocation0]]
  $region57: #{tpu_custom_call.1} parent=0
    _
  %s6 = ssub.s32 1, %s4
  %s7 = scalar_select 0, %s6, %s4
  $region1: #{tpu_custom_call.1} parent=0
    #allocation2 [shape = 'u8[131072]{0}', space=vmem, size = 0x20000, scoped, tag = 'input window, operand 0']
    #allocation3 [shape = 's32[2]{0}', space=sflag, size = 0x8, scoped, tag = 'scoped memory for tpu_custom_call.1']
    #allocation4 [shape = 's32[2]{0}', space=sflag, size = 0x8, scoped, tag = 'scoped memory for tpu_custom_call.1']
    #allocation5 [shape = 'u8[196608]{0}', space=vmem, size = 0x30000, scoped, tag = 'input window, operand 1, single buffered']
    #allocation6 [shape = 's32[1]{0}', space=sflag, size = 0x4, scoped, tag = 'scoped memory for tpu_custom_call.1']
    #allocation7 [shape = 'u8[4096]{0}', space=vmem, size = 0x1000, scoped, tag = 'input window, operand 2, single buffered']
    #allocation8 [shape = 'u8[1024]{0}', space=vmem, size = 0x400, scoped, tag = 'output window, operand 0']
    %8 = vsyncpa [#allocation3], 0
    %s9 = scalar_lea.sflag [#allocation3], 1
    %10 = vsyncpa %s9, 0
    %11 = vsyncpa [#allocation6], 0
    %12 = vsyncpa [#allocation4], 0
    %s13 = scalar_lea.sflag [#allocation4], 1
    %14 = vsyncpa %s13, 0
    loop: start=0, step=1, limit=4
    $region2: #{tpu_custom_call.1} parent=1 // loop_pre_header
      _
    $region3: #{tpu_custom_call.1} parent=1 // loop_header
      %s16 = sphi 0, %s20
      %p17 = scmp.ge.s32.totalorder %s16, 4
      %s26 = sphi 0, %s28
      %s29 = sphi 0, %s26
      %s30 = sphi 0, %s29
      %s46 = sphi 0, %s30
      %s50 = sphi 0, %s50
      %s52 = sphi 0, %s50
      %s53 = sphi 0, %s52
      %s67 = sphi 0, %s53
      %s71 = sphi 0, %s71
      %s73 = sphi 0, %s71
      %s74 = sphi 0, %s73
      %s88 = sphi 0, %s74
      %s94 = sphi 0, %s96
      %s97 = sphi 0, %s94
      %s98 = sphi 0, %s97
      %s114 = sphi 0, %s98
    $region4: #{tpu_custom_call.1} parent=1 // loop_header_branch
      %19 = sbr.rel (%p17) target = $region8
    $region5: #{tpu_custom_call.1} parent=1 // loop_body
      %s21 = ssub.s32 %s16, 1
      %s22 = ssub.s32 %s16, 2
      %s23 = sadd.s32 %s16, 1
      %s24 = ssub.s32 %s16, %s23
      %p25 = scmp.eq.s32.totalorder %s24, 0
      %s27 = sadd.s32 %s26, 1
      %s28 = scalar_select %p25, %s26, %s27
      %p31 = pneg %p25
      %p32 = scmp.eq.s32.totalorder %s16, 1
      %p33 = por %p31, %p32
      %p34 = scmp.ne.s32.totalorder %s26, %s29
      %p35 = scmp.eq.s32.totalorder %s16, 0
      %p36 = por %p34, %p35
      %p37 = scmp.ne.s32.totalorder %s26, %s29
      %p38 = scmp.eq.s32.totalorder %s21, 1
      %p39 = por %p37, %p38
      %p40 = scmp.ne.s32.totalorder %s29, %s30
      %p41 = scmp.eq.s32.totalorder %s21, 0
      %p42 = por %p40, %p41
      %p43 = scmp.ne.s32.totalorder %s29, %s30
      %p44 = scmp.eq.s32.totalorder %s22, 1
      %p45 = por %p43, %p44
      %p47 = scmp.ne.s32.totalorder %s30, %s46
      %p48 = scmp.eq.s32.totalorder %s22, 0
      %p49 = por %p47, %p48
      %s51 = sadd.s32 %s50, 1
      %p54 = scmp.eq.s32.totalorder %s16, 1
      %p55 = scmp.ne.s32.totalorder %s50, %s52
      %p56 = scmp.eq.s32.totalorder %s16, 0
      %p57 = por %p55, %p56
      %p58 = scmp.ne.s32.totalorder %s50, %s52
      %p59 = scmp.eq.s32.totalorder %s21, 1
      %p60 = por %p58, %p59
      %p61 = scmp.ne.s32.totalorder %s52, %s53
      %p62 = scmp.eq.s32.totalorder %s21, 0
      %p63 = por %p61, %p62
      %p64 = scmp.ne.s32.totalorder %s52, %s53
      %p65 = scmp.eq.s32.totalorder %s22, 1
      %p66 = por %p64, %p65
      %p68 = scmp.ne.s32.totalorder %s53, %s67
      %p69 = scmp.eq.s32.totalorder %s22, 0
      %p70 = por %p68, %p69
      %s72 = sadd.s32 %s71, 1
      %p75 = scmp.eq.s32.totalorder %s16, 1
      %p76 = scmp.ne.s32.totalorder %s71, %s73
      %p77 = scmp.eq.s32.totalorder %s16, 0
      %p78 = por %p76, %p77
      %p79 = scmp.ne.s32.totalorder %s71, %s73
      %p80 = scmp.eq.s32.totalorder %s21, 1
      %p81 = por %p79, %p80
      %p82 = scmp.ne.s32.totalorder %s73, %s74
      %p83 = scmp.eq.s32.totalorder %s21, 0
      %p84 = por %p82, %p83
      %p85 = scmp.ne.s32.totalorder %s73, %s74
      %p86 = scmp.eq.s32.totalorder %s22, 1
      %p87 = por %p85, %p86
      %p89 = scmp.ne.s32.totalorder %s74, %s88
      %p90 = scmp.eq.s32.totalorder %s22, 0
      %p91 = por %p89, %p90
      %s92 = ssub.s32 %s16, %s23
      %p93 = scmp.eq.s32.totalorder %s92, 0
      %s95 = sadd.s32 %s94, 1
      %s96 = scalar_select %p93, %s94, %s95
      %p99 = pneg %p93
      %p100 = scmp.eq.s32.totalorder %s16, 1
      %p101 = por %p99, %p100
      %p102 = scmp.ne.s32.totalorder %s94, %s97
      %p103 = scmp.eq.s32.totalorder %s16, 0
      %p104 = por %p102, %p103
      %p105 = scmp.ne.s32.totalorder %s94, %s97
      %p106 = scmp.eq.s32.totalorder %s21, 1
      %p107 = por %p105, %p106
      %p108 = scmp.ne.s32.totalorder %s97, %s98
      %p109 = scmp.eq.s32.totalorder %s21, 0
      %p110 = por %p108, %p109
      %p111 = scmp.ne.s32.totalorder %s97, %s98
      %p112 = scmp.eq.s32.totalorder %s22, 1
      %p113 = por %p111, %p112
      %p115 = scmp.ne.s32.totalorder %s98, %s114
      %p116 = scmp.eq.s32.totalorder %s22, 0
      %p117 = por %p115, %p116
      %p118 = scmp.le.s32.totalorder 1, %s16
      %p119 = scmp.lt.s32.totalorder %s16, 3
      %p120 = pnand %p118, %p119
      %p121 = pneg %p120
      // Predicated region
      $region9: #{tpu_custom_call.1} parent=5 // pred_check
        _
      $region10: #{tpu_custom_call.1} parent=5 // pred_check_branch
        %123 = sbr.rel (%p120) target = $region12
      $region11: #{tpu_custom_call.1} parent=5 // pred_region
        %s124 = ssub.s32 %s16, 1
        // Predicated region
        $region13: #{tpu_custom_call.1} parent=11 // pred_check
          %p125 = pneg %p63
        $region14: #{tpu_custom_call.1} parent=11 // pred_check_branch
          %127 = sbr.rel (%p125) target = $region16
        $region15: #{tpu_custom_call.1} parent=11 // pred_region
          %s129 = ssub.s32 6144, 6144
          %130 = vsyncadd [#allocation6], %s129
          %s131 = sshll.u32 [#allocation5], 4
          %s132 = int_to_ptr.vmem [resolvable:$true] %s131
          %137 = dma.hbm_to_vmem [thread:$0]  %s1, 6144, %s132, [#allocation6], 128, 128, 8
        $region16: #{tpu_custom_call.1} parent=11 // pred_fallthru
          _
        // Predicated region
        $region17: #{tpu_custom_call.1} parent=11 // pred_check
          %p138 = pneg %p84
        $region18: #{tpu_custom_call.1} parent=11 // pred_check_branch
          %140 = sbr.rel (%p138) target = $region20
        $region19: #{tpu_custom_call.1} parent=11 // pred_region
          %s142 = ssub.s32 128, 128
          %143 = vsyncadd [#allocation6], %s142
          %s145 = sshll.u32 [#allocation7], 4
          %s146 = int_to_ptr.vmem [resolvable:$true] %s145
          %148 = dma.hbm_to_vmem [thread:$0]  %s2, 128, %s146, [#allocation6]
        $region20: #{tpu_custom_call.1} parent=11 // pred_fallthru
          _
      $region12: #{tpu_custom_call.1} parent=5 // pred_fallthru
        _
      %p149 = scmp.lt.s32.totalorder %s16, 2
      // Predicated region
      $region21: #{tpu_custom_call.1} parent=5 // pred_check
        %p150 = pneg %p149
      $region22: #{tpu_custom_call.1} parent=5 // pred_check_branch
        %152 = sbr.rel (%p150) target = $region24
      $region23: #{tpu_custom_call.1} parent=5 // pred_region
        // Predicated region
        $region25: #{tpu_custom_call.1} parent=23 // pred_check
          %p153 = pneg %p36
        $region26: #{tpu_custom_call.1} parent=23 // pred_check_branch
          %155 = sbr.rel (%p153) target = $region28
        $region27: #{tpu_custom_call.1} parent=23 // pred_region
          %s156 = sand.u32 %s26, 1
          %s157 = scalar_lea.sflag [#allocation3], %s156
          %s158 = sand.u32 %s26, 1
          %s159 = smul.addr %s158, 128
          %s160 = scalar_lea.vmem [#allocation2], %s159
          %s162 = ssub.s32 2048, 2048
          %163 = vsyncadd %s157, %s162
          %s164 = smul.addr %s16, 16
          %s165 = smul.addr %s164, 128
          %s166 = scalar_lea.hbm %s0, %s165
          %s167 = sshll.u32 %s160, 4
          %s168 = int_to_ptr.vmem [resolvable:$true] %s167
          %173 = dma.hbm_to_vmem [thread:$0]  %s166, 2048, %s168, %s157, 128, 128, 8
        $region28: #{tpu_custom_call.1} parent=23 // pred_fallthru
          _
      $region24: #{tpu_custom_call.1} parent=5 // pred_fallthru
        _
      %p174 = scmp.le.s32.totalorder 1, %s16
      %p175 = scmp.lt.s32.totalorder %s16, 3
      %p176 = pnand %p174, %p175
      %p177 = pneg %p176
      // Predicated region
      $region29: #{tpu_custom_call.1} parent=5 // pred_check
        _
      $region30: #{tpu_custom_call.1} parent=5 // pred_check_branch
        %179 = sbr.rel (%p176) target = $region32
      $region31: #{tpu_custom_call.1} parent=5 // pred_region
        %s180 = ssub.s32 %s16, 1
        %s181 = sand.u32 %s29, 1
        %s182 = scalar_lea.sflag [#allocation3], %s181
        %s183 = sand.u32 %s29, 1
        %s184 = smul.addr %s183, 128
        %s185 = scalar_lea.vmem [#allocation2], %s184
        // Predicated region
        $region33: #{tpu_custom_call.1} parent=31 // pred_check
          %p186 = pneg %p42
        $region34: #{tpu_custom_call.1} parent=31 // pred_check_branch
          %188 = sbr.rel (%p186) target = $region36
        $region35: #{tpu_custom_call.1} parent=31 // pred_region
          %189 = dma.done %s182, 2048
        $region36: #{tpu_custom_call.1} parent=31 // pred_fallthru
          _
        // Predicated region
        $region37: #{tpu_custom_call.1} parent=31 // pred_check
          %p190 = pneg %p63
        $region38: #{tpu_custom_call.1} parent=31 // pred_check_branch
          %192 = sbr.rel (%p190) target = $region40
        $region39: #{tpu_custom_call.1} parent=31 // pred_region
          %193 = dma.done [#allocation6], 6144
        $region40: #{tpu_custom_call.1} parent=31 // pred_fallthru
          _
        // Predicated region
        $region41: #{tpu_custom_call.1} parent=31 // pred_check
          %p194 = pneg %p84
        $region42: #{tpu_custom_call.1} parent=31 // pred_check_branch
          %196 = sbr.rel (%p194) target = $region44
        $region43: #{tpu_custom_call.1} parent=31 // pred_region
          %197 = dma.done [#allocation6], 128
        $region44: #{tpu_custom_call.1} parent=31 // pred_fallthru
          _
        %s198 = sand.u32 %s29, 1
        %s199 = scalar_lea.sflag [#allocation3], %s198
        %s200 = sand.u32 %s29, 1
        %s201 = smul.addr %s200, 128
        %s202 = scalar_lea.vmem [#allocation2], %s201
        %p203 = pneg %p42
        %p204 = pneg %p39
        %p205 = pneg %p63
        %p206 = pneg %p60
        %p207 = pneg %p84
        %p208 = pneg %p81
        %p209 = pneg %p110
        %p210 = pneg %p107
        %s211 = sand.u32 %s97, 1
        %s212 = scalar_lea.sflag [#allocation4], %s211
        %s213 = sand.u32 %s97, 1
        %s214 = scalar_lea.vmem [#allocation8], %s213
        %v215 = vlaneseq
        %v216 = vshrl.u32 %v215, 7
        %v217 = vadd.s32 %v216, 8
        %v218 = vadd.s32 %v216, 16
        %v219 = vadd.s32 %v216, 24
        %v220 = vadd.s32 %v216, 32
        %v221 = vadd.s32 %v216, 40
        %v222 = vadd.s32 %v216, 48
        %v223 = vadd.s32 %v216, 56
        %v224 = vadd.s32 %v216, 64
        %v225 = vadd.s32 %v216, 72
        %v226 = vadd.s32 %v216, 80
        %v227 = vadd.s32 %v216, 88
        %v228 = vadd.s32 %v216, 96
        %v229 = vadd.s32 %v216, 104
        %v230 = vadd.s32 %v216, 112
        %v231 = vadd.s32 %v216, 120
        %vm232 = vcmp.ge.s32.totalorder %v216, 1
        %vm233 = vcmp.ge.s32.totalorder %v217, 1
        %vm234 = vcmp.ge.s32.totalorder %v218, 1
        %vm235 = vcmp.ge.s32.totalorder %v219, 1
        %vm236 = vcmp.ge.s32.totalorder %v220, 1
        %vm237 = vcmp.ge.s32.totalorder %v221, 1
        %vm238 = vcmp.ge.s32.totalorder %v222, 1
        %vm239 = vcmp.ge.s32.totalorder %v223, 1
        %vm240 = vcmp.ge.s32.totalorder %v224, 1
        %vm241 = vcmp.ge.s32.totalorder %v225, 1
        %vm242 = vcmp.ge.s32.totalorder %v226, 1
        %vm243 = vcmp.ge.s32.totalorder %v227, 1
        %vm244 = vcmp.ge.s32.totalorder %v228, 1
        %vm245 = vcmp.ge.s32.totalorder %v229, 1
        %vm246 = vcmp.ge.s32.totalorder %v230, 1
        %vm247 = vcmp.ge.s32.totalorder %v231, 1
        %vm248 = vcmp.lt.s32.totalorder %v216, 17
        %vm249 = vcmp.lt.s32.totalorder %v217, 17
        %vm250 = vcmp.lt.s32.totalorder %v218, 17
        %vm251 = vcmp.lt.s32.totalorder %v219, 17
        %vm252 = vcmp.lt.s32.totalorder %v220, 17
        %vm253 = vcmp.lt.s32.totalorder %v221, 17
        %vm254 = vcmp.lt.s32.totalorder %v222, 17
        %vm255 = vcmp.lt.s32.totalorder %v223, 17
        %vm256 = vcmp.lt.s32.totalorder %v224, 17
        %vm257 = vcmp.lt.s32.totalorder %v225, 17
        %vm258 = vcmp.lt.s32.totalorder %v226, 17
        %vm259 = vcmp.lt.s32.totalorder %v227, 17
        %vm260 = vcmp.lt.s32.totalorder %v228, 17
        %vm261 = vcmp.lt.s32.totalorder %v229, 17
        %vm262 = vcmp.lt.s32.totalorder %v230, 17
        %vm263 = vcmp.lt.s32.totalorder %v231, 17
        %vm264 = vmand %vm232, %vm248
        %vm265 = vmand %vm233, %vm249
        %vm266 = vmand %vm234, %vm250
        %vm267 = vmand %vm235, %vm251
        %vm268 = vmand %vm236, %vm252
        %vm269 = vmand %vm237, %vm253
        %vm270 = vmand %vm238, %vm254
        %vm271 = vmand %vm239, %vm255
        %vm272 = vmand %vm240, %vm256
        %vm273 = vmand %vm241, %vm257
        %vm274 = vmand %vm242, %vm258
        %vm275 = vmand %vm243, %vm259
        %vm276 = vmand %vm244, %vm260
        %vm277 = vmand %vm245, %vm261
        %vm278 = vmand %vm246, %vm262
        %vm279 = vmand %vm247, %vm263
        %v280 = vsel %vm264, 1, 0
        %v281 = vsel %vm265, 1, 0
        %v282 = vsel %vm266, 1, 0
        %v283 = vsel %vm267, 1, 0
        %v284 = vsel %vm268, 1, 0
        %v285 = vsel %vm269, 1, 0
        %v286 = vsel %vm270, 1, 0
        %v287 = vsel %vm271, 1, 0
        %v288 = vsel %vm272, 1, 0
        %v289 = vsel %vm273, 1, 0
        %v290 = vsel %vm274, 1, 0
        %v291 = vsel %vm275, 1, 0
        %v292 = vsel %vm276, 1, 0
        %v293 = vsel %vm277, 1, 0
        %v294 = vsel %vm278, 1, 0
        %v295 = vsel %vm279, 1, 0
        %v296 = vcvt.s32.f32 %v280
        %v297 = vcvt.s32.f32 %v281
        %v298 = vcvt.s32.f32 %v282
        %v299 = vcvt.s32.f32 %v283
        %v300 = vcvt.s32.f32 %v284
        %v301 = vcvt.s32.f32 %v285
        %v302 = vcvt.s32.f32 %v286
        %v303 = vcvt.s32.f32 %v287
        %v304 = vcvt.s32.f32 %v288
        %v305 = vcvt.s32.f32 %v289
        %v306 = vcvt.s32.f32 %v290
        %v307 = vcvt.s32.f32 %v291
        %v308 = vcvt.s32.f32 %v292
        %v309 = vcvt.s32.f32 %v293
        %v310 = vcvt.s32.f32 %v294
        %v311 = vcvt.s32.f32 %v295
        %vm312 = vcmp.ge.s32.totalorder %v216, 0
        %vm313 = vcmp.ge.s32.totalorder %v217, 0
        %vm314 = vcmp.ge.s32.totalorder %v218, 0
        %vm315 = vcmp.ge.s32.totalorder %v219, 0
        %vm316 = vcmp.ge.s32.totalorder %v220, 0
        %vm317 = vcmp.ge.s32.totalorder %v221, 0
        %vm318 = vcmp.ge.s32.totalorder %v222, 0
        %vm319 = vcmp.ge.s32.totalorder %v223, 0
        %vm320 = vcmp.ge.s32.totalorder %v224, 0
        %vm321 = vcmp.ge.s32.totalorder %v225, 0
        %vm322 = vcmp.ge.s32.totalorder %v226, 0
        %vm323 = vcmp.ge.s32.totalorder %v227, 0
        %vm324 = vcmp.ge.s32.totalorder %v228, 0
        %vm325 = vcmp.ge.s32.totalorder %v229, 0
        %vm326 = vcmp.ge.s32.totalorder %v230, 0
        %vm327 = vcmp.ge.s32.totalorder %v231, 0
        %vm328 = vcmp.lt.s32.totalorder %v216, 16
        %vm329 = vcmp.lt.s32.totalorder %v217, 16
        %vm330 = vcmp.lt.s32.totalorder %v218, 16
        %vm331 = vcmp.lt.s32.totalorder %v219, 16
        %vm332 = vcmp.lt.s32.totalorder %v220, 16
        %vm333 = vcmp.lt.s32.totalorder %v221, 16
        %vm334 = vcmp.lt.s32.totalorder %v222, 16
        %vm335 = vcmp.lt.s32.totalorder %v223, 16
        %vm336 = vcmp.lt.s32.totalorder %v224, 16
        %vm337 = vcmp.lt.s32.totalorder %v225, 16
        %vm338 = vcmp.lt.s32.totalorder %v226, 16
        %vm339 = vcmp.lt.s32.totalorder %v227, 16
        %vm340 = vcmp.lt.s32.totalorder %v228, 16
        %vm341 = vcmp.lt.s32.totalorder %v229, 16
        %vm342 = vcmp.lt.s32.totalorder %v230, 16
        %vm343 = vcmp.lt.s32.totalorder %v231, 16
        %vm344 = vmand %vm312, %vm328
        %vm345 = vmand %vm313, %vm329
        %vm346 = vmand %vm314, %vm330
        %vm347 = vmand %vm315, %vm331
        %vm348 = vmand %vm316, %vm332
        %vm349 = vmand %vm317, %vm333
        %vm350 = vmand %vm318, %vm334
        %vm351 = vmand %vm319, %vm335
        %vm352 = vmand %vm320, %vm336
        %vm353 = vmand %vm321, %vm337
        %vm354 = vmand %vm322, %vm338
        %vm355 = vmand %vm323, %vm339
        %vm356 = vmand %vm324, %vm340
        %vm357 = vmand %vm325, %vm341
        %vm358 = vmand %vm326, %vm342
        %vm359 = vmand %vm327, %vm343
        %v360 = vsel %vm344, 1, 0
        %v361 = vsel %vm345, 1, 0
        %v362 = vsel %vm346, 1, 0
        %v363 = vsel %vm347, 1, 0
        %v364 = vsel %vm348, 1, 0
        %v365 = vsel %vm349, 1, 0
        %v366 = vsel %vm350, 1, 0
        %v367 = vsel %vm351, 1, 0
        %v368 = vsel %vm352, 1, 0
        %v369 = vsel %vm353, 1, 0
        %v370 = vsel %vm354, 1, 0
        %v371 = vsel %vm355, 1, 0
        %v372 = vsel %vm356, 1, 0
        %v373 = vsel %vm357, 1, 0
        %v374 = vsel %vm358, 1, 0
        %v375 = vsel %vm359, 1, 0
        %v376 = vcvt.s32.f32 %v360
        %v377 = vcvt.s32.f32 %v361
        %v378 = vcvt.s32.f32 %v362
        %v379 = vcvt.s32.f32 %v363
        %v380 = vcvt.s32.f32 %v364
        %v381 = vcvt.s32.f32 %v365
        %v382 = vcvt.s32.f32 %v366
        %v383 = vcvt.s32.f32 %v367
        %v384 = vcvt.s32.f32 %v368
        %v385 = vcvt.s32.f32 %v369
        %v386 = vcvt.s32.f32 %v370
        %v387 = vcvt.s32.f32 %v371
        %v388 = vcvt.s32.f32 %v372
        %v389 = vcvt.s32.f32 %v373
        %v390 = vcvt.s32.f32 %v374
        %v391 = vcvt.s32.f32 %v375
        %vm392 = vcmp.ge.s32.totalorder %v216, 4294967295
        %vm393 = vcmp.ge.s32.totalorder %v217, 4294967295
        %vm394 = vcmp.ge.s32.totalorder %v218, 4294967295
        %vm395 = vcmp.ge.s32.totalorder %v219, 4294967295
        %vm396 = vcmp.ge.s32.totalorder %v220, 4294967295
        %vm397 = vcmp.ge.s32.totalorder %v221, 4294967295
        %vm398 = vcmp.ge.s32.totalorder %v222, 4294967295
        %vm399 = vcmp.ge.s32.totalorder %v223, 4294967295
        %vm400 = vcmp.ge.s32.totalorder %v224, 4294967295
        %vm401 = vcmp.ge.s32.totalorder %v225, 4294967295
        %vm402 = vcmp.ge.s32.totalorder %v226, 4294967295
        %vm403 = vcmp.ge.s32.totalorder %v227, 4294967295
        %vm404 = vcmp.ge.s32.totalorder %v228, 4294967295
        %vm405 = vcmp.ge.s32.totalorder %v229, 4294967295
        %vm406 = vcmp.ge.s32.totalorder %v230, 4294967295
        %vm407 = vcmp.ge.s32.totalorder %v231, 4294967295
        %vm408 = vcmp.lt.s32.totalorder %v216, 15
        %vm409 = vcmp.lt.s32.totalorder %v217, 15
        %vm410 = vcmp.lt.s32.totalorder %v218, 15
        %vm411 = vcmp.lt.s32.totalorder %v219, 15
        %vm412 = vcmp.lt.s32.totalorder %v220, 15
        %vm413 = vcmp.lt.s32.totalorder %v221, 15
        %vm414 = vcmp.lt.s32.totalorder %v222, 15
        %vm415 = vcmp.lt.s32.totalorder %v223, 15
        %vm416 = vcmp.lt.s32.totalorder %v224, 15
        %vm417 = vcmp.lt.s32.totalorder %v225, 15
        %vm418 = vcmp.lt.s32.totalorder %v226, 15
        %vm419 = vcmp.lt.s32.totalorder %v227, 15
        %vm420 = vcmp.lt.s32.totalorder %v228, 15
        %vm421 = vcmp.lt.s32.totalorder %v229, 15
        %vm422 = vcmp.lt.s32.totalorder %v230, 15
        %vm423 = vcmp.lt.s32.totalorder %v231, 15
        %vm424 = vmand %vm392, %vm408
        %vm425 = vmand %vm393, %vm409
        %vm426 = vmand %vm394, %vm410
        %vm427 = vmand %vm395, %vm411
        %vm428 = vmand %vm396, %vm412
        %vm429 = vmand %vm397, %vm413
        %vm430 = vmand %vm398, %vm414
        %vm431 = vmand %vm399, %vm415
        %vm432 = vmand %vm400, %vm416
        %vm433 = vmand %vm401, %vm417
        %vm434 = vmand %vm402, %vm418
        %vm435 = vmand %vm403, %vm419
        %vm436 = vmand %vm404, %vm420
        %vm437 = vmand %vm405, %vm421
        %vm438 = vmand %vm406, %vm422
        %vm439 = vmand %vm407, %vm423
        %v440 = vsel %vm424, 1, 0
        %v441 = vsel %vm425, 1, 0
        %v442 = vsel %vm426, 1, 0
        %v443 = vsel %vm427, 1, 0
        %v444 = vsel %vm428, 1, 0
        %v445 = vsel %vm429, 1, 0
        %v446 = vsel %vm430, 1, 0
        %v447 = vsel %vm431, 1, 0
        %v448 = vsel %vm432, 1, 0
        %v449 = vsel %vm433, 1, 0
        %v450 = vsel %vm434, 1, 0
        %v451 = vsel %vm435, 1, 0
        %v452 = vsel %vm436, 1, 0
        %v453 = vsel %vm437, 1, 0
        %v454 = vsel %vm438, 1, 0
        %v455 = vsel %vm439, 1, 0
        %v456 = vcvt.s32.f32 %v440
        %v457 = vcvt.s32.f32 %v441
        %v458 = vcvt.s32.f32 %v442
        %v459 = vcvt.s32.f32 %v443
        %v460 = vcvt.s32.f32 %v444
        %v461 = vcvt.s32.f32 %v445
        %v462 = vcvt.s32.f32 %v446
        %v463 = vcvt.s32.f32 %v447
        %v464 = vcvt.s32.f32 %v448
        %v465 = vcvt.s32.f32 %v449
        %v466 = vcvt.s32.f32 %v450
        %v467 = vcvt.s32.f32 %v451
        %v468 = vcvt.s32.f32 %v452
        %v469 = vcvt.s32.f32 %v453
        %v470 = vcvt.s32.f32 %v454
        %v471 = vcvt.s32.f32 %v455
        %v472 = vld [vmem:[#allocation7] sm:$0x1]
        %v473 = vld [vmem:[#allocation7 + $0x1] sm:$0x1]
        %v474 = vld [vmem:[#allocation7 + $0x2] sm:$0x1]
        %v475 = vld [vmem:[#allocation7 + $0x3] sm:$0x1]
        %v476 = vld [vmem:[#allocation7 + $0x4] sm:$0x1]
        %v477 = vld [vmem:[#allocation7 + $0x5] sm:$0x1]
        %v478 = vld [vmem:[#allocation7 + $0x6] sm:$0x1]
        %v479 = vld [vmem:[%s185] sm:$0xff]
        %v480 = vld [vmem:[%s185 + $0x8] sm:$0xff]
        %v481 = vld [vmem:[%s185 + $0x10] sm:$0xff]
        %v482 = vld [vmem:[%s185 + $0x18] sm:$0xff]
        %v483 = vld [vmem:[%s185 + $0x20] sm:$0xff]
        %v484 = vld [vmem:[%s185 + $0x28] sm:$0xff]
        %v485 = vld [vmem:[%s185 + $0x30] sm:$0xff]
        %v486 = vld [vmem:[%s185 + $0x38] sm:$0xff]
        %v487 = vld [vmem:[%s185 + $0x40] sm:$0xff]
        %v488 = vld [vmem:[%s185 + $0x48] sm:$0xff]
        %v489 = vld [vmem:[%s185 + $0x50] sm:$0xff]
        %v490 = vld [vmem:[%s185 + $0x58] sm:$0xff]
        %v491 = vld [vmem:[%s185 + $0x60] sm:$0xff]
        %v492 = vld [vmem:[%s185 + $0x68] sm:$0xff]
        %v493 = vld [vmem:[%s185 + $0x70] sm:$0xff]
        %v494 = vld [vmem:[%s185 + $0x78] sm:$0xff]
        %v495 = vld [vmem:[#allocation5] sm:$0xff]
        %v496 = vld [vmem:[#allocation5 + $0x8] sm:$0xff]
        %v497 = vld [vmem:[#allocation5 + $0x10] sm:$0xff]
        %v498 = vld [vmem:[#allocation5 + $0x18] sm:$0xff]
        %v499 = vld [vmem:[#allocation5 + $0x20] sm:$0xff]
        %v500 = vld [vmem:[#allocation5 + $0x28] sm:$0xff]
        %v501 = vld [vmem:[#allocation5 + $0x30] sm:$0xff]
        %v502 = vld [vmem:[#allocation5 + $0x38] sm:$0xff]
        %v503 = vld [vmem:[#allocation5 + $0x40] sm:$0xff]
        %v504 = vld [vmem:[#allocation5 + $0x48] sm:$0xff]
        %v505 = vld [vmem:[#allocation5 + $0x50] sm:$0xff]
        %v506 = vld [vmem:[#allocation5 + $0x58] sm:$0xff]
        %v507 = vld [vmem:[#allocation5 + $0x60] sm:$0xff]
        %v508 = vld [vmem:[#allocation5 + $0x68] sm:$0xff]
        %v509 = vld [vmem:[#allocation5 + $0x70] sm:$0xff]
        %v510 = vld [vmem:[#allocation5 + $0x78] sm:$0xff]
        %511 = vmatprep.subr.mxu0 0.0
        %512 = vmatpush1.msra.mxu0 %v510
        %513 = vmatprep.subr.mxu0 0.0
        %514 = vmatpush1.msra.mxu0 %v509
        %515 = vmatprep.subr.mxu0 0.0
        %516 = vmatpush1.msra.mxu0 %v508
        %517 = vmatprep.subr.mxu0 0.0
        %518 = vmatpush1.msra.mxu0 %v507
        %519 = vmatprep.subr.mxu0 0.0
        %520 = vmatpush1.msra.mxu0 %v506
        %521 = vmatprep.subr.mxu0 0.0
        %522 = vmatpush1.msra.mxu0 %v505
        %523 = vmatprep.subr.mxu0 0.0
        %524 = vmatpush1.msra.mxu0 %v504
        %525 = vmatprep.subr.mxu0 0.0
        %526 = vmatpush1.msra.mxu0 %v503
        %527 = vmatprep.subr.mxu0 0.0
        %528 = vmatpush1.msra.mxu0 %v502
        %529 = vmatprep.subr.mxu0 0.0
        %530 = vmatpush1.msra.mxu0 %v501
        %531 = vmatprep.subr.mxu0 0.0
        %532 = vmatpush1.msra.mxu0 %v500
        %533 = vmatprep.subr.mxu0 0.0
        %534 = vmatpush1.msra.mxu0 %v499
        %535 = vmatprep.subr.mxu0 0.0
        %536 = vmatpush1.msra.mxu0 %v498
        %537 = vmatprep.subr.mxu0 0.0
        %538 = vmatpush1.msra.mxu0 %v497
        %539 = vmatprep.subr.mxu0 0.0
        %540 = vmatpush1.msra.mxu0 %v496
        %541 = vmatprep.subr.mxu0 0.0
        %542 = vmatpush1.msra.mxu0 %v495
        %543 = vmatprep.subr.mxu0 0.0
        %544 = vmatpush2.msra.mxu0 0.0
        %545 = vmatprep.subr.mxu0 0.0
        %546 = vmatpush2.msra.mxu0 0.0
        %547 = vmatprep.subr.mxu0 0.0
        %548 = vmatpush2.msra.mxu0 0.0
        %549 = vmatprep.subr.mxu0 0.0
        %550 = vmatpush2.msra.mxu0 0.0
        %551 = vmatprep.subr.mxu0 0.0
        %552 = vmatpush2.msra.mxu0 0.0
        %553 = vmatprep.subr.mxu0 0.0
        %554 = vmatpush2.msra.mxu0 0.0
        %555 = vmatprep.subr.mxu0 0.0
        %556 = vmatpush2.msra.mxu0 0.0
        %557 = vmatprep.subr.mxu0 0.0
        %558 = vmatpush2.msra.mxu0 0.0
        %559 = vmatprep.subr.mxu0 0.0
        %560 = vmatpush2.msra.mxu0 0.0
        %561 = vmatprep.subr.mxu0 0.0
        %562 = vmatpush2.msra.mxu0 0.0
        %563 = vmatprep.subr.mxu0 0.0
        %564 = vmatpush2.msra.mxu0 0.0
        %565 = vmatprep.subr.mxu0 0.0
        %566 = vmatpush2.msra.mxu0 0.0
        %567 = vmatprep.subr.mxu0 0.0
        %568 = vmatpush2.msra.mxu0 0.0
        %569 = vmatprep.subr.mxu0 0.0
        %570 = vmatpush2.msra.mxu0 0.0
        %571 = vmatprep.subr.mxu0 0.0
        %572 = vmatpush2.msra.mxu0 0.0
        %573 = vmatprep.subr.mxu0 0.0
        %574 = vmatpush2.msra.mxu0 0.0
        %575 = vmatprep.mubr.f32.mxu0 0.0
        %576 = vmatmul.mubr.f32.gmra.mxu0 %v479
        %v577 = vpop.f32.mrf.mxu0
        %v578 = vadd.f32 0.0, %v577
        %v579 = vpop.f32.mrf.mxu0
        %580 = vmatprep.mubr.f32.mxu0 0.0
        %581 = vmatmul.mubr.f32.gmra.mxu0 %v480
        %v582 = vpop.f32.mrf.mxu0
        %v583 = vadd.f32 0.0, %v582
        %v584 = vpop.f32.mrf.mxu0
        %585 = vmatprep.mubr.f32.mxu0 0.0
        %586 = vmatmul.mubr.f32.gmra.mxu0 %v481
        %v587 = vpop.f32.mrf.mxu0
        %v588 = vadd.f32 0.0, %v587
        %v589 = vpop.f32.mrf.mxu0
        %590 = vmatprep.mubr.f32.mxu0 0.0
        %591 = vmatmul.mubr.f32.gmra.mxu0 %v482
        %v592 = vpop.f32.mrf.mxu0
        %v593 = vadd.f32 0.0, %v592
        %v594 = vpop.f32.mrf.mxu0
        %595 = vmatprep.mubr.f32.mxu0 0.0
        %596 = vmatmul.mubr.f32.gmra.mxu0 %v483
        %v597 = vpop.f32.mrf.mxu0
        %v598 = vadd.f32 0.0, %v597
        %v599 = vpop.f32.mrf.mxu0
        %600 = vmatprep.mubr.f32.mxu0 0.0
        %601 = vmatmul.mubr.f32.gmra.mxu0 %v484
        %v602 = vpop.f32.mrf.mxu0
        %v603 = vadd.f32 0.0, %v602
        %v604 = vpop.f32.mrf.mxu0
        %605 = vmatprep.mubr.f32.mxu0 0.0
        %606 = vmatmul.mubr.f32.gmra.mxu0 %v485
        %v607 = vpop.f32.mrf.mxu0
        %v608 = vadd.f32 0.0, %v607
        %v609 = vpop.f32.mrf.mxu0
        %610 = vmatprep.mubr.f32.mxu0 0.0
        %611 = vmatmul.mubr.f32.gmra.mxu0 %v486
        %v612 = vpop.f32.mrf.mxu0
        %v613 = vadd.f32 0.0, %v612
        %v614 = vpop.f32.mrf.mxu0
        %615 = vmatprep.mubr.f32.mxu0 0.0
        %616 = vmatmul.mubr.f32.gmra.mxu0 %v487
        %v617 = vpop.f32.mrf.mxu0
        %v618 = vadd.f32 0.0, %v617
        %v619 = vpop.f32.mrf.mxu0
        %620 = vmatprep.mubr.f32.mxu0 0.0
        %621 = vmatmul.mubr.f32.gmra.mxu0 %v488
        %v622 = vpop.f32.mrf.mxu0
        %v623 = vadd.f32 0.0, %v622
        %v624 = vpop.f32.mrf.mxu0
        %625 = vmatprep.mubr.f32.mxu0 0.0
        %626 = vmatmul.mubr.f32.gmra.mxu0 %v489
        %v627 = vpop.f32.mrf.mxu0
        %v628 = vadd.f32 0.0, %v627
        %v629 = vpop.f32.mrf.mxu0
        %630 = vmatprep.mubr.f32.mxu0 0.0
        %631 = vmatmul.mubr.f32.gmra.mxu0 %v490
        %v632 = vpop.f32.mrf.mxu0
        %v633 = vadd.f32 0.0, %v632
        %v634 = vpop.f32.mrf.mxu0
        %635 = vmatprep.mubr.f32.mxu0 0.0
        %636 = vmatmul.mubr.f32.gmra.mxu0 %v491
        %v637 = vpop.f32.mrf.mxu0
        %v638 = vadd.f32 0.0, %v637
        %v639 = vpop.f32.mrf.mxu0
        %640 = vmatprep.mubr.f32.mxu0 0.0
        %641 = vmatmul.mubr.f32.gmra.mxu0 %v492
        %v642 = vpop.f32.mrf.mxu0
        %v643 = vadd.f32 0.0, %v642
        %v644 = vpop.f32.mrf.mxu0
        %645 = vmatprep.mubr.f32.mxu0 0.0
        %646 = vmatmul.mubr.f32.gmra.mxu0 %v493
        %v647 = vpop.f32.mrf.mxu0
        %v648 = vadd.f32 0.0, %v647
        %v649 = vpop.f32.mrf.mxu0
        %650 = vmatprep.mubr.f32.mxu0 0.0
        %651 = vmatmul.mubr.f32.gmra.mxu0 %v494
        %v652 = vpop.f32.mrf.mxu0
        %v653 = vadd.f32 0.0, %v652
        %v654 = vpop.f32.mrf.mxu0
        %655 = vdwg.mxu0
        %v656 = vrot.slane %v578, 7
        %v657 = vrot.slane %v583, 7
        %v658 = vrot.slane %v588, 7
        %v659 = vrot.slane %v593, 7
        %v660 = vrot.slane %v598, 7
        %v661 = vrot.slane %v603, 7
        %v662 = vrot.slane %v608, 7
        %v663 = vrot.slane %v613, 7
        %v664 = vrot.slane %v618, 7
        %v665 = vrot.slane %v623, 7
        %v666 = vrot.slane %v628, 7
        %v667 = vrot.slane %v633, 7
        %v668 = vrot.slane %v638, 7
        %v669 = vrot.slane %v643, 7
        %v670 = vrot.slane %v648, 7
        %v671 = vrot.slane %v653, 7
        %vm672 = vcmp.lt.s32.totalorder %v216, 1
        %v673 = vsel %vm672, %v670, %v671
        %v674 = vsel %vm672, %v669, %v670
        %v675 = vsel %vm672, %v668, %v669
        %v676 = vsel %vm672, %v667, %v668
        %v677 = vsel %vm672, %v666, %v667
        %v678 = vsel %vm672, %v665, %v666
        %v679 = vsel %vm672, %v664, %v665
        %v680 = vsel %vm672, %v663, %v664
        %v681 = vsel %vm672, %v662, %v663
        %v682 = vsel %vm672, %v661, %v662
        %v683 = vsel %vm672, %v660, %v661
        %v684 = vsel %vm672, %v659, %v660
        %v685 = vsel %vm672, %v658, %v659
        %v686 = vsel %vm672, %v657, %v658
        %v687 = vsel %vm672, %v656, %v657
        %v688 = vsel %vm672, %v671, %v656
        %v689 = vmul.f32 %v688, %v296
        %v690 = vmul.f32 %v687, %v297
        %v691 = vmul.f32 %v686, %v298
        %v692 = vmul.f32 %v685, %v299
        %v693 = vmul.f32 %v684, %v300
        %v694 = vmul.f32 %v683, %v301
        %v695 = vmul.f32 %v682, %v302
        %v696 = vmul.f32 %v681, %v303
        %v697 = vmul.f32 %v680, %v304
        %v698 = vmul.f32 %v679, %v305
        %v699 = vmul.f32 %v678, %v306
        %v700 = vmul.f32 %v677, %v307
        %v701 = vmul.f32 %v676, %v308
        %v702 = vmul.f32 %v675, %v309
        %v703 = vmul.f32 %v674, %v310
        %v704 = vmul.f32 %v673, %v311
        %v705 = vld [vmem:[#allocation5 + $0x80] sm:$0xff]
        %v706 = vld [vmem:[#allocation5 + $0x88] sm:$0xff]
        %v707 = vld [vmem:[#allocation5 + $0x90] sm:$0xff]
        %v708 = vld [vmem:[#allocation5 + $0x98] sm:$0xff]
        %v709 = vld [vmem:[#allocation5 + $0xa0] sm:$0xff]
        %v710 = vld [vmem:[#allocation5 + $0xa8] sm:$0xff]
        %v711 = vld [vmem:[#allocation5 + $0xb0] sm:$0xff]
        %v712 = vld [vmem:[#allocation5 + $0xb8] sm:$0xff]
        %v713 = vld [vmem:[#allocation5 + $0xc0] sm:$0xff]
        %v714 = vld [vmem:[#allocation5 + $0xc8] sm:$0xff]
        %v715 = vld [vmem:[#allocation5 + $0xd0] sm:$0xff]
        %v716 = vld [vmem:[#allocation5 + $0xd8] sm:$0xff]
        %v717 = vld [vmem:[#allocation5 + $0xe0] sm:$0xff]
        %v718 = vld [vmem:[#allocation5 + $0xe8] sm:$0xff]
        %v719 = vld [vmem:[#allocation5 + $0xf0] sm:$0xff]
        %v720 = vld [vmem:[#allocation5 + $0xf8] sm:$0xff]
        %721 = vmatprep.subr.mxu0 0.0
        %722 = vmatpush1.msra.mxu0 %v720
        %723 = vmatprep.subr.mxu0 0.0
        %724 = vmatpush1.msra.mxu0 %v719
        %725 = vmatprep.subr.mxu0 0.0
        %726 = vmatpush1.msra.mxu0 %v718
        %727 = vmatprep.subr.mxu0 0.0
        %728 = vmatpush1.msra.mxu0 %v717
        %729 = vmatprep.subr.mxu0 0.0
        %730 = vmatpush1.msra.mxu0 %v716
        %731 = vmatprep.subr.mxu0 0.0
        %732 = vmatpush1.msra.mxu0 %v715
        %733 = vmatprep.subr.mxu0 0.0
        %734 = vmatpush1.msra.mxu0 %v714
        %735 = vmatprep.subr.mxu0 0.0
        %736 = vmatpush1.msra.mxu0 %v713
        %737 = vmatprep.subr.mxu0 0.0
        %738 = vmatpush1.msra.mxu0 %v712
        %739 = vmatprep.subr.mxu0 0.0
        %740 = vmatpush1.msra.mxu0 %v711
        %741 = vmatprep.subr.mxu0 0.0
        %742 = vmatpush1.msra.mxu0 %v710
        %743 = vmatprep.subr.mxu0 0.0
        %744 = vmatpush1.msra.mxu0 %v709
        %745 = vmatprep.subr.mxu0 0.0
        %746 = vmatpush1.msra.mxu0 %v708
        %747 = vmatprep.subr.mxu0 0.0
        %748 = vmatpush1.msra.mxu0 %v707
        %749 = vmatprep.subr.mxu0 0.0
        %750 = vmatpush1.msra.mxu0 %v706
        %751 = vmatprep.subr.mxu0 0.0
        %752 = vmatpush1.msra.mxu0 %v705
        %753 = vmatprep.subr.mxu0 0.0
        %754 = vmatpush2.msra.mxu0 0.0
        %755 = vmatprep.subr.mxu0 0.0
        %756 = vmatpush2.msra.mxu0 0.0
        %757 = vmatprep.subr.mxu0 0.0
        %758 = vmatpush2.msra.mxu0 0.0
        %759 = vmatprep.subr.mxu0 0.0
        %760 = vmatpush2.msra.mxu0 0.0
        %761 = vmatprep.subr.mxu0 0.0
        %762 = vmatpush2.msra.mxu0 0.0
        %763 = vmatprep.subr.mxu0 0.0
        %764 = vmatpush2.msra.mxu0 0.0
        %765 = vmatprep.subr.mxu0 0.0
        %766 = vmatpush2.msra.mxu0 0.0
        %767 = vmatprep.subr.mxu0 0.0
        %768 = vmatpush2.msra.mxu0 0.0
        %769 = vmatprep.subr.mxu0 0.0
        %770 = vmatpush2.msra.mxu0 0.0
        %771 = vmatprep.subr.mxu0 0.0
        %772 = vmatpush2.msra.mxu0 0.0
        %773 = vmatprep.subr.mxu0 0.0
        %774 = vmatpush2.msra.mxu0 0.0
        %775 = vmatprep.subr.mxu0 0.0
        %776 = vmatpush2.msra.mxu0 0.0
        %777 = vmatprep.subr.mxu0 0.0
        %778 = vmatpush2.msra.mxu0 0.0
        %779 = vmatprep.subr.mxu0 0.0
        %780 = vmatpush2.msra.mxu0 0.0
        %781 = vmatprep.subr.mxu0 0.0
        %782 = vmatpush2.msra.mxu0 0.0
        %783 = vmatprep.subr.mxu0 0.0
        %784 = vmatpush2.msra.mxu0 0.0
        %785 = vmatprep.mubr.f32.mxu0 0.0
        %786 = vmatmul.mubr.f32.gmra.mxu0 %v479
        %v787 = vpop.f32.mrf.mxu0
        %v788 = vadd.f32 0.0, %v787
        %v789 = vpop.f32.mrf.mxu0
        %790 = vmatprep.mubr.f32.mxu0 0.0
        %791 = vmatmul.mubr.f32.gmra.mxu0 %v480
        %v792 = vpop.f32.mrf.mxu0
        %v793 = vadd.f32 0.0, %v792
        %v794 = vpop.f32.mrf.mxu0
        %795 = vmatprep.mubr.f32.mxu0 0.0
        %796 = vmatmul.mubr.f32.gmra.mxu0 %v481
        %v797 = vpop.f32.mrf.mxu0
        %v798 = vadd.f32 0.0, %v797
        %v799 = vpop.f32.mrf.mxu0
        %800 = vmatprep.mubr.f32.mxu0 0.0
        %801 = vmatmul.mubr.f32.gmra.mxu0 %v482
        %v802 = vpop.f32.mrf.mxu0
        %v803 = vadd.f32 0.0, %v802
        %v804 = vpop.f32.mrf.mxu0
        %805 = vmatprep.mubr.f32.mxu0 0.0
        %806 = vmatmul.mubr.f32.gmra.mxu0 %v483
        %v807 = vpop.f32.mrf.mxu0
        %v808 = vadd.f32 0.0, %v807
        %v809 = vpop.f32.mrf.mxu0
        %810 = vmatprep.mubr.f32.mxu0 0.0
        %811 = vmatmul.mubr.f32.gmra.mxu0 %v484
        %v812 = vpop.f32.mrf.mxu0
        %v813 = vadd.f32 0.0, %v812
        %v814 = vpop.f32.mrf.mxu0
        %815 = vmatprep.mubr.f32.mxu0 0.0
        %816 = vmatmul.mubr.f32.gmra.mxu0 %v485
        %v817 = vpop.f32.mrf.mxu0
        %v818 = vadd.f32 0.0, %v817
        %v819 = vpop.f32.mrf.mxu0
        %820 = vmatprep.mubr.f32.mxu0 0.0
        %821 = vmatmul.mubr.f32.gmra.mxu0 %v486
        %v822 = vpop.f32.mrf.mxu0
        %v823 = vadd.f32 0.0, %v822
        %v824 = vpop.f32.mrf.mxu0
        %825 = vmatprep.mubr.f32.mxu0 0.0
        %826 = vmatmul.mubr.f32.gmra.mxu0 %v487
        %v827 = vpop.f32.mrf.mxu0
        %v828 = vadd.f32 0.0, %v827
        %v829 = vpop.f32.mrf.mxu0
        %830 = vmatprep.mubr.f32.mxu0 0.0
        %831 = vmatmul.mubr.f32.gmra.mxu0 %v488
        %v832 = vpop.f32.mrf.mxu0
        %v833 = vadd.f32 0.0, %v832
        %v834 = vpop.f32.mrf.mxu0
        %835 = vmatprep.mubr.f32.mxu0 0.0
        %836 = vmatmul.mubr.f32.gmra.mxu0 %v489
        %v837 = vpop.f32.mrf.mxu0
        %v838 = vadd.f32 0.0, %v837
        %v839 = vpop.f32.mrf.mxu0
        %840 = vmatprep.mubr.f32.mxu0 0.0
        %841 = vmatmul.mubr.f32.gmra.mxu0 %v490
        %v842 = vpop.f32.mrf.mxu0
        %v843 = vadd.f32 0.0, %v842
        %v844 = vpop.f32.mrf.mxu0
        %845 = vmatprep.mubr.f32.mxu0 0.0
        %846 = vmatmul.mubr.f32.gmra.mxu0 %v491
        %v847 = vpop.f32.mrf.mxu0
        %v848 = vadd.f32 0.0, %v847
        %v849 = vpop.f32.mrf.mxu0
        %850 = vmatprep.mubr.f32.mxu0 0.0
        %851 = vmatmul.mubr.f32.gmra.mxu0 %v492
        %v852 = vpop.f32.mrf.mxu0
        %v853 = vadd.f32 0.0, %v852
        %v854 = vpop.f32.mrf.mxu0
        %855 = vmatprep.mubr.f32.mxu0 0.0
        %856 = vmatmul.mubr.f32.gmra.mxu0 %v493
        %v857 = vpop.f32.mrf.mxu0
        %v858 = vadd.f32 0.0, %v857
        %v859 = vpop.f32.mrf.mxu0
        %860 = vmatprep.mubr.f32.mxu0 0.0
        %861 = vmatmul.mubr.f32.gmra.mxu0 %v494
        %v862 = vpop.f32.mrf.mxu0
        %v863 = vadd.f32 0.0, %v862
        %v864 = vpop.f32.mrf.mxu0
        %865 = vdwg.mxu0
        %v866 = vmul.f32 %v788, %v376
        %v867 = vmul.f32 %v793, %v377
        %v868 = vmul.f32 %v798, %v378
        %v869 = vmul.f32 %v803, %v379
        %v870 = vmul.f32 %v808, %v380
        %v871 = vmul.f32 %v813, %v381
        %v872 = vmul.f32 %v818, %v382
        %v873 = vmul.f32 %v823, %v383
        %v874 = vmul.f32 %v828, %v384
        %v875 = vmul.f32 %v833, %v385
        %v876 = vmul.f32 %v838, %v386
        %v877 = vmul.f32 %v843, %v387
        %v878 = vmul.f32 %v848, %v388
        %v879 = vmul.f32 %v853, %v389
        %v880 = vmul.f32 %v858, %v390
        %v881 = vmul.f32 %v863, %v391
        %v882 = vadd.f32 %v689, %v866
        %v883 = vadd.f32 %v690, %v867
        %v884 = vadd.f32 %v691, %v868
        %v885 = vadd.f32 %v692, %v869
        %v886 = vadd.f32 %v693, %v870
        %v887 = vadd.f32 %v694, %v871
        %v888 = vadd.f32 %v695, %v872
        %v889 = vadd.f32 %v696, %v873
        %v890 = vadd.f32 %v697, %v874
        %v891 = vadd.f32 %v698, %v875
        %v892 = vadd.f32 %v699, %v876
        %v893 = vadd.f32 %v700, %v877
        %v894 = vadd.f32 %v701, %v878
        %v895 = vadd.f32 %v702, %v879
        %v896 = vadd.f32 %v703, %v880
        %v897 = vadd.f32 %v704, %v881
        %v898 = vld [vmem:[#allocation5 + $0x100] sm:$0xff]
        %v899 = vld [vmem:[#allocation5 + $0x108] sm:$0xff]
        %v900 = vld [vmem:[#allocation5 + $0x110] sm:$0xff]
        %v901 = vld [vmem:[#allocation5 + $0x118] sm:$0xff]
        %v902 = vld [vmem:[#allocation5 + $0x120] sm:$0xff]
        %v903 = vld [vmem:[#allocation5 + $0x128] sm:$0xff]
        %v904 = vld [vmem:[#allocation5 + $0x130] sm:$0xff]
        %v905 = vld [vmem:[#allocation5 + $0x138] sm:$0xff]
        %v906 = vld [vmem:[#allocation5 + $0x140] sm:$0xff]
        %v907 = vld [vmem:[#allocation5 + $0x148] sm:$0xff]
        %v908 = vld [vmem:[#allocation5 + $0x150] sm:$0xff]
        %v909 = vld [vmem:[#allocation5 + $0x158] sm:$0xff]
        %v910 = vld [vmem:[#allocation5 + $0x160] sm:$0xff]
        %v911 = vld [vmem:[#allocation5 + $0x168] sm:$0xff]
        %v912 = vld [vmem:[#allocation5 + $0x170] sm:$0xff]
        %v913 = vld [vmem:[#allocation5 + $0x178] sm:$0xff]
        %914 = vmatprep.subr.mxu0 0.0
        %915 = vmatpush1.msra.mxu0 %v913
        %916 = vmatprep.subr.mxu0 0.0
        %917 = vmatpush1.msra.mxu0 %v912
        %918 = vmatprep.subr.mxu0 0.0
        %919 = vmatpush1.msra.mxu0 %v911
        %920 = vmatprep.subr.mxu0 0.0
        %921 = vmatpush1.msra.mxu0 %v910
        %922 = vmatprep.subr.mxu0 0.0
        %923 = vmatpush1.msra.mxu0 %v909
        %924 = vmatprep.subr.mxu0 0.0
        %925 = vmatpush1.msra.mxu0 %v908
        %926 = vmatprep.subr.mxu0 0.0
        %927 = vmatpush1.msra.mxu0 %v907
        %928 = vmatprep.subr.mxu0 0.0
        %929 = vmatpush1.msra.mxu0 %v906
        %930 = vmatprep.subr.mxu0 0.0
        %931 = vmatpush1.msra.mxu0 %v905
        %932 = vmatprep.subr.mxu0 0.0
        %933 = vmatpush1.msra.mxu0 %v904
        %934 = vmatprep.subr.mxu0 0.0
        %935 = vmatpush1.msra.mxu0 %v903
        %936 = vmatprep.subr.mxu0 0.0
        %937 = vmatpush1.msra.mxu0 %v902
        %938 = vmatprep.subr.mxu0 0.0
        %939 = vmatpush1.msra.mxu0 %v901
        %940 = vmatprep.subr.mxu0 0.0
        %941 = vmatpush1.msra.mxu0 %v900
        %942 = vmatprep.subr.mxu0 0.0
        %943 = vmatpush1.msra.mxu0 %v899
        %944 = vmatprep.subr.mxu0 0.0
        %945 = vmatpush1.msra.mxu0 %v898
        %946 = vmatprep.subr.mxu0 0.0
        %947 = vmatpush2.msra.mxu0 0.0
        %948 = vmatprep.subr.mxu0 0.0
        %949 = vmatpush2.msra.mxu0 0.0
        %950 = vmatprep.subr.mxu0 0.0
        %951 = vmatpush2.msra.mxu0 0.0
        %952 = vmatprep.subr.mxu0 0.0
        %953 = vmatpush2.msra.mxu0 0.0
        %954 = vmatprep.subr.mxu0 0.0
        %955 = vmatpush2.msra.mxu0 0.0
        %956 = vmatprep.subr.mxu0 0.0
        %957 = vmatpush2.msra.mxu0 0.0
        %958 = vmatprep.subr.mxu0 0.0
        %959 = vmatpush2.msra.mxu0 0.0
        %960 = vmatprep.subr.mxu0 0.0
        %961 = vmatpush2.msra.mxu0 0.0
        %962 = vmatprep.subr.mxu0 0.0
        %963 = vmatpush2.msra.mxu0 0.0
        %964 = vmatprep.subr.mxu0 0.0
        %965 = vmatpush2.msra.mxu0 0.0
        %966 = vmatprep.subr.mxu0 0.0
        %967 = vmatpush2.msra.mxu0 0.0
        %968 = vmatprep.subr.mxu0 0.0
        %969 = vmatpush2.msra.mxu0 0.0
        %970 = vmatprep.subr.mxu0 0.0
        %971 = vmatpush2.msra.mxu0 0.0
        %972 = vmatprep.subr.mxu0 0.0
        %973 = vmatpush2.msra.mxu0 0.0
        %974 = vmatprep.subr.mxu0 0.0
        %975 = vmatpush2.msra.mxu0 0.0
        %976 = vmatprep.subr.mxu0 0.0
        %977 = vmatpush2.msra.mxu0 0.0
        %978 = vmatprep.mubr.f32.mxu0 0.0
        %979 = vmatmul.mubr.f32.gmra.mxu0 %v479
        %v980 = vpop.f32.mrf.mxu0
        %v981 = vadd.f32 0.0, %v980
        %v982 = vpop.f32.mrf.mxu0
        %983 = vmatprep.mubr.f32.mxu0 0.0
        %984 = vmatmul.mubr.f32.gmra.mxu0 %v480
        %v985 = vpop.f32.mrf.mxu0
        %v986 = vadd.f32 0.0, %v985
        %v987 = vpop.f32.mrf.mxu0
        %988 = vmatprep.mubr.f32.mxu0 0.0
        %989 = vmatmul.mubr.f32.gmra.mxu0 %v481
        %v990 = vpop.f32.mrf.mxu0
        %v991 = vadd.f32 0.0, %v990
        %v992 = vpop.f32.mrf.mxu0
        %993 = vmatprep.mubr.f32.mxu0 0.0
        %994 = vmatmul.mubr.f32.gmra.mxu0 %v482
        %v995 = vpop.f32.mrf.mxu0
        %v996 = vadd.f32 0.0, %v995
        %v997 = vpop.f32.mrf.mxu0
        %998 = vmatprep.mubr.f32.mxu0 0.0
        %999 = vmatmul.mubr.f32.gmra.mxu0 %v483
        %v1000 = vpop.f32.mrf.mxu0
        %v1001 = vadd.f32 0.0, %v1000
        %v1002 = vpop.f32.mrf.mxu0
        %1003 = vmatprep.mubr.f32.mxu0 0.0
        %1004 = vmatmul.mubr.f32.gmra.mxu0 %v484
        %v1005 = vpop.f32.mrf.mxu0
        %v1006 = vadd.f32 0.0, %v1005
        %v1007 = vpop.f32.mrf.mxu0
        %1008 = vmatprep.mubr.f32.mxu0 0.0
        %1009 = vmatmul.mubr.f32.gmra.mxu0 %v485
        %v1010 = vpop.f32.mrf.mxu0
        %v1011 = vadd.f32 0.0, %v1010
        %v1012 = vpop.f32.mrf.mxu0
        %1013 = vmatprep.mubr.f32.mxu0 0.0
        %1014 = vmatmul.mubr.f32.gmra.mxu0 %v486
        %v1015 = vpop.f32.mrf.mxu0
        %v1016 = vadd.f32 0.0, %v1015
        %v1017 = vpop.f32.mrf.mxu0
        %1018 = vmatprep.mubr.f32.mxu0 0.0
        %1019 = vmatmul.mubr.f32.gmra.mxu0 %v487
        %v1020 = vpop.f32.mrf.mxu0
        %v1021 = vadd.f32 0.0, %v1020
        %v1022 = vpop.f32.mrf.mxu0
        %1023 = vmatprep.mubr.f32.mxu0 0.0
        %1024 = vmatmul.mubr.f32.gmra.mxu0 %v488
        %v1025 = vpop.f32.mrf.mxu0
        %v1026 = vadd.f32 0.0, %v1025
        %v1027 = vpop.f32.mrf.mxu0
        %1028 = vmatprep.mubr.f32.mxu0 0.0
        %1029 = vmatmul.mubr.f32.gmra.mxu0 %v489
        %v1030 = vpop.f32.mrf.mxu0
        %v1031 = vadd.f32 0.0, %v1030
        %v1032 = vpop.f32.mrf.mxu0
        %1033 = vmatprep.mubr.f32.mxu0 0.0
        %1034 = vmatmul.mubr.f32.gmra.mxu0 %v490
        %v1035 = vpop.f32.mrf.mxu0
        %v1036 = vadd.f32 0.0, %v1035
        %v1037 = vpop.f32.mrf.mxu0
        %1038 = vmatprep.mubr.f32.mxu0 0.0
        %1039 = vmatmul.mubr.f32.gmra.mxu0 %v491
        %v1040 = vpop.f32.mrf.mxu0
        %v1041 = vadd.f32 0.0, %v1040
        %v1042 = vpop.f32.mrf.mxu0
        %1043 = vmatprep.mubr.f32.mxu0 0.0
        %1044 = vmatmul.mubr.f32.gmra.mxu0 %v492
        %v1045 = vpop.f32.mrf.mxu0
        %v1046 = vadd.f32 0.0, %v1045
        %v1047 = vpop.f32.mrf.mxu0
        %1048 = vmatprep.mubr.f32.mxu0 0.0
        %1049 = vmatmul.mubr.f32.gmra.mxu0 %v493
        %v1050 = vpop.f32.mrf.mxu0
        %v1051 = vadd.f32 0.0, %v1050
        %v1052 = vpop.f32.mrf.mxu0
        %1053 = vmatprep.mubr.f32.mxu0 0.0
        %1054 = vmatmul.mubr.f32.gmra.mxu0 %v494
        %v1055 = vpop.f32.mrf.mxu0
        %v1056 = vadd.f32 0.0, %v1055
        %v1057 = vpop.f32.mrf.mxu0
        %1058 = vdwg.mxu0
        %v1059 = vrot.slane %v981, 1
        %v1060 = vrot.slane %v986, 1
        %v1061 = vrot.slane %v991, 1
        %v1062 = vrot.slane %v996, 1
        %v1063 = vrot.slane %v1001, 1
        %v1064 = vrot.slane %v1006, 1
        %v1065 = vrot.slane %v1011, 1
        %v1066 = vrot.slane %v1016, 1
        %v1067 = vrot.slane %v1021, 1
        %v1068 = vrot.slane %v1026, 1
        %v1069 = vrot.slane %v1031, 1
        %v1070 = vrot.slane %v1036, 1
        %v1071 = vrot.slane %v1041, 1
        %v1072 = vrot.slane %v1046, 1
        %v1073 = vrot.slane %v1051, 1
        %v1074 = vrot.slane %v1056, 1
        %vm1075 = vcmp.lt.s32.totalorder %v216, 7
        %v1076 = vsel %vm1075, %v1073, %v1074
        %v1077 = vsel %vm1075, %v1072, %v1073
        %v1078 = vsel %vm1075, %v1071, %v1072
        %v1079 = vsel %vm1075, %v1070, %v1071
        %v1080 = vsel %vm1075, %v1069, %v1070
        %v1081 = vsel %vm1075, %v1068, %v1069
        %v1082 = vsel %vm1075, %v1067, %v1068
        %v1083 = vsel %vm1075, %v1066, %v1067
        %v1084 = vsel %vm1075, %v1065, %v1066
        %v1085 = vsel %vm1075, %v1064, %v1065
        %v1086 = vsel %vm1075, %v1063, %v1064
        %v1087 = vsel %vm1075, %v1062, %v1063
        %v1088 = vsel %vm1075, %v1061, %v1062
        %v1089 = vsel %vm1075, %v1060, %v1061
        %v1090 = vsel %vm1075, %v1059, %v1060
        %v1091 = vsel %vm1075, %v1074, %v1059
        %v1092 = vmul.f32 %v1090, %v456
        %v1093 = vmul.f32 %v1089, %v457
        %v1094 = vmul.f32 %v1088, %v458
        %v1095 = vmul.f32 %v1087, %v459
        %v1096 = vmul.f32 %v1086, %v460
        %v1097 = vmul.f32 %v1085, %v461
        %v1098 = vmul.f32 %v1084, %v462
        %v1099 = vmul.f32 %v1083, %v463
        %v1100 = vmul.f32 %v1082, %v464
        %v1101 = vmul.f32 %v1081, %v465
        %v1102 = vmul.f32 %v1080, %v466
        %v1103 = vmul.f32 %v1079, %v467
        %v1104 = vmul.f32 %v1078, %v468
        %v1105 = vmul.f32 %v1077, %v469
        %v1106 = vmul.f32 %v1076, %v470
        %v1107 = vmul.f32 %v1091, %v471
        %v1108 = vadd.f32 %v882, %v1092
        %v1109 = vadd.f32 %v883, %v1093
        %v1110 = vadd.f32 %v884, %v1094
        %v1111 = vadd.f32 %v885, %v1095
        %v1112 = vadd.f32 %v886, %v1096
        %v1113 = vadd.f32 %v887, %v1097
        %v1114 = vadd.f32 %v888, %v1098
        %v1115 = vadd.f32 %v889, %v1099
        %v1116 = vadd.f32 %v890, %v1100
        %v1117 = vadd.f32 %v891, %v1101
        %v1118 = vadd.f32 %v892, %v1102
        %v1119 = vadd.f32 %v893, %v1103
        %v1120 = vadd.f32 %v894, %v1104
        %v1121 = vadd.f32 %v895, %v1105
        %v1122 = vadd.f32 %v896, %v1106
        %v1123 = vadd.f32 %v897, %v1107
        %v1124 = vlaneseq
        %v1125 = vshrl.u32 %v1124, 7
        %v1126 = vsub.s32 0, %v1125
        %v1127 = vrot.slane %v472, %v1126
        %v1128 = vadd.f32 %v1108, %v1127
        %v1129 = vadd.f32 %v1109, %v1127
        %v1130 = vadd.f32 %v1110, %v1127
        %v1131 = vadd.f32 %v1111, %v1127
        %v1132 = vadd.f32 %v1112, %v1127
        %v1133 = vadd.f32 %v1113, %v1127
        %v1134 = vadd.f32 %v1114, %v1127
        %v1135 = vadd.f32 %v1115, %v1127
        %v1136 = vadd.f32 %v1116, %v1127
        %v1137 = vadd.f32 %v1117, %v1127
        %v1138 = vadd.f32 %v1118, %v1127
        %v1139 = vadd.f32 %v1119, %v1127
        %v1140 = vadd.f32 %v1120, %v1127
        %v1141 = vadd.f32 %v1121, %v1127
        %v1142 = vadd.f32 %v1122, %v1127
        %v1143 = vadd.f32 %v1123, %v1127
        %1144 = vadd.xlane.f32.xlu0 %v1128
        %v1145 = vpop.xlane.xlu0 %1144
        %1146 = vadd.xlane.f32.xlu0 %v1129
        %v1147 = vpop.xlane.xlu0 %1146
        %1148 = vadd.xlane.f32.xlu0 %v1130
        %v1149 = vpop.xlane.xlu0 %1148
        %1150 = vadd.xlane.f32.xlu0 %v1131
        %v1151 = vpop.xlane.xlu0 %1150
        %1152 = vadd.xlane.f32.xlu0 %v1132
        %v1153 = vpop.xlane.xlu0 %1152
        %1154 = vadd.xlane.f32.xlu0 %v1133
        %v1155 = vpop.xlane.xlu0 %1154
        %1156 = vadd.xlane.f32.xlu0 %v1134
        %v1157 = vpop.xlane.xlu0 %1156
        %1158 = vadd.xlane.f32.xlu0 %v1135
        %v1159 = vpop.xlane.xlu0 %1158
        %1160 = vadd.xlane.f32.xlu0 %v1136
        %v1161 = vpop.xlane.xlu0 %1160
        %1162 = vadd.xlane.f32.xlu0 %v1137
        %v1163 = vpop.xlane.xlu0 %1162
        %1164 = vadd.xlane.f32.xlu0 %v1138
        %v1165 = vpop.xlane.xlu0 %1164
        %1166 = vadd.xlane.f32.xlu0 %v1139
        %v1167 = vpop.xlane.xlu0 %1166
        %1168 = vadd.xlane.f32.xlu0 %v1140
        %v1169 = vpop.xlane.xlu0 %1168
        %1170 = vadd.xlane.f32.xlu0 %v1141
        %v1171 = vpop.xlane.xlu0 %1170
        %1172 = vadd.xlane.f32.xlu0 %v1142
        %v1173 = vpop.xlane.xlu0 %1172
        %1174 = vadd.xlane.f32.xlu0 %v1143
        %v1175 = vpop.xlane.xlu0 %1174
        %v1176 = vmul.f32 %v1145, 0.03125
        %v1177 = vmul.f32 %v1147, 0.03125
        %v1178 = vmul.f32 %v1149, 0.03125
        %v1179 = vmul.f32 %v1151, 0.03125
        %v1180 = vmul.f32 %v1153, 0.03125
        %v1181 = vmul.f32 %v1155, 0.03125
        %v1182 = vmul.f32 %v1157, 0.03125
        %v1183 = vmul.f32 %v1159, 0.03125
        %v1184 = vmul.f32 %v1161, 0.03125
        %v1185 = vmul.f32 %v1163, 0.03125
        %v1186 = vmul.f32 %v1165, 0.03125
        %v1187 = vmul.f32 %v1167, 0.03125
        %v1188 = vmul.f32 %v1169, 0.03125
        %v1189 = vmul.f32 %v1171, 0.03125
        %v1190 = vmul.f32 %v1173, 0.03125
        %v1191 = vmul.f32 %v1175, 0.03125
        %v1192 = vmul.f32 %v1128, %v1128
        %v1193 = vmul.f32 %v1129, %v1129
        %v1194 = vmul.f32 %v1130, %v1130
        %v1195 = vmul.f32 %v1131, %v1131
        %v1196 = vmul.f32 %v1132, %v1132
        %v1197 = vmul.f32 %v1133, %v1133
        %v1198 = vmul.f32 %v1134, %v1134
        %v1199 = vmul.f32 %v1135, %v1135
        %v1200 = vmul.f32 %v1136, %v1136
        %v1201 = vmul.f32 %v1137, %v1137
        %v1202 = vmul.f32 %v1138, %v1138
        %v1203 = vmul.f32 %v1139, %v1139
        %v1204 = vmul.f32 %v1140, %v1140
        %v1205 = vmul.f32 %v1141, %v1141
        %v1206 = vmul.f32 %v1142, %v1142
        %v1207 = vmul.f32 %v1143, %v1143
        %1208 = vadd.xlane.f32.xlu0 %v1192
        %v1209 = vpop.xlane.xlu0 %1208
        %1210 = vadd.xlane.f32.xlu0 %v1193
        %v1211 = vpop.xlane.xlu0 %1210
        %1212 = vadd.xlane.f32.xlu0 %v1194
        %v1213 = vpop.xlane.xlu0 %1212
        %1214 = vadd.xlane.f32.xlu0 %v1195
        %v1215 = vpop.xlane.xlu0 %1214
        %1216 = vadd.xlane.f32.xlu0 %v1196
        %v1217 = vpop.xlane.xlu0 %1216
        %1218 = vadd.xlane.f32.xlu0 %v1197
        %v1219 = vpop.xlane.xlu0 %1218
        %1220 = vadd.xlane.f32.xlu0 %v1198
        %v1221 = vpop.xlane.xlu0 %1220
        %1222 = vadd.xlane.f32.xlu0 %v1199
        %v1223 = vpop.xlane.xlu0 %1222
        %1224 = vadd.xlane.f32.xlu0 %v1200
        %v1225 = vpop.xlane.xlu0 %1224
        %1226 = vadd.xlane.f32.xlu0 %v1201
        %v1227 = vpop.xlane.xlu0 %1226
        %1228 = vadd.xlane.f32.xlu0 %v1202
        %v1229 = vpop.xlane.xlu0 %1228
        %1230 = vadd.xlane.f32.xlu0 %v1203
        %v1231 = vpop.xlane.xlu0 %1230
        %1232 = vadd.xlane.f32.xlu0 %v1204
        %v1233 = vpop.xlane.xlu0 %1232
        %1234 = vadd.xlane.f32.xlu0 %v1205
        %v1235 = vpop.xlane.xlu0 %1234
        %1236 = vadd.xlane.f32.xlu0 %v1206
        %v1237 = vpop.xlane.xlu0 %1236
        %1238 = vadd.xlane.f32.xlu0 %v1207
        %v1239 = vpop.xlane.xlu0 %1238
        %v1240 = vmul.f32 %v1209, 0.03125
        %v1241 = vmul.f32 %v1211, 0.03125
        %v1242 = vmul.f32 %v1213, 0.03125
        %v1243 = vmul.f32 %v1215, 0.03125
        %v1244 = vmul.f32 %v1217, 0.03125
        %v1245 = vmul.f32 %v1219, 0.03125
        %v1246 = vmul.f32 %v1221, 0.03125
        %v1247 = vmul.f32 %v1223, 0.03125
        %v1248 = vmul.f32 %v1225, 0.03125
        %v1249 = vmul.f32 %v1227, 0.03125
        %v1250 = vmul.f32 %v1229, 0.03125
        %v1251 = vmul.f32 %v1231, 0.03125
        %v1252 = vmul.f32 %v1233, 0.03125
        %v1253 = vmul.f32 %v1235, 0.03125
        %v1254 = vmul.f32 %v1237, 0.03125
        %v1255 = vmul.f32 %v1239, 0.03125
        %v1256 = vmul.f32 %v1176, %v1176
        %v1257 = vmul.f32 %v1177, %v1177
        %v1258 = vmul.f32 %v1178, %v1178
        %v1259 = vmul.f32 %v1179, %v1179
        %v1260 = vmul.f32 %v1180, %v1180
        %v1261 = vmul.f32 %v1181, %v1181
        %v1262 = vmul.f32 %v1182, %v1182
        %v1263 = vmul.f32 %v1183, %v1183
        %v1264 = vmul.f32 %v1184, %v1184
        %v1265 = vmul.f32 %v1185, %v1185
        %v1266 = vmul.f32 %v1186, %v1186
        %v1267 = vmul.f32 %v1187, %v1187
        %v1268 = vmul.f32 %v1188, %v1188
        %v1269 = vmul.f32 %v1189, %v1189
        %v1270 = vmul.f32 %v1190, %v1190
        %v1271 = vmul.f32 %v1191, %v1191
        %v1272 = vsub.f32 %v1240, %v1256
        %v1273 = vsub.f32 %v1241, %v1257
        %v1274 = vsub.f32 %v1242, %v1258
        %v1275 = vsub.f32 %v1243, %v1259
        %v1276 = vsub.f32 %v1244, %v1260
        %v1277 = vsub.f32 %v1245, %v1261
        %v1278 = vsub.f32 %v1246, %v1262
        %v1279 = vsub.f32 %v1247, %v1263
        %v1280 = vsub.f32 %v1248, %v1264
        %v1281 = vsub.f32 %v1249, %v1265
        %v1282 = vsub.f32 %v1250, %v1266
        %v1283 = vsub.f32 %v1251, %v1267
        %v1284 = vsub.f32 %v1252, %v1268
        %v1285 = vsub.f32 %v1253, %v1269
        %v1286 = vsub.f32 %v1254, %v1270
        %v1287 = vsub.f32 %v1255, %v1271
        %v1288 = vmax.f32 %v1272, 0.0
        %v1289 = vmax.f32 %v1273, 0.0
        %v1290 = vmax.f32 %v1274, 0.0
        %v1291 = vmax.f32 %v1275, 0.0
        %v1292 = vmax.f32 %v1276, 0.0
        %v1293 = vmax.f32 %v1277, 0.0
        %v1294 = vmax.f32 %v1278, 0.0
        %v1295 = vmax.f32 %v1279, 0.0
        %v1296 = vmax.f32 %v1280, 0.0
        %v1297 = vmax.f32 %v1281, 0.0
        %v1298 = vmax.f32 %v1282, 0.0
        %v1299 = vmax.f32 %v1283, 0.0
        %v1300 = vmax.f32 %v1284, 0.0
        %v1301 = vmax.f32 %v1285, 0.0
        %v1302 = vmax.f32 %v1286, 0.0
        %v1303 = vmax.f32 %v1287, 0.0
        %v1304 = vsub.f32 %v1128, %v1176
        %v1305 = vsub.f32 %v1129, %v1177
        %v1306 = vsub.f32 %v1130, %v1178
        %v1307 = vsub.f32 %v1131, %v1179
        %v1308 = vsub.f32 %v1132, %v1180
        %v1309 = vsub.f32 %v1133, %v1181
        %v1310 = vsub.f32 %v1134, %v1182
        %v1311 = vsub.f32 %v1135, %v1183
        %v1312 = vsub.f32 %v1136, %v1184
        %v1313 = vsub.f32 %v1137, %v1185
        %v1314 = vsub.f32 %v1138, %v1186
        %v1315 = vsub.f32 %v1139, %v1187
        %v1316 = vsub.f32 %v1140, %v1188
        %v1317 = vsub.f32 %v1141, %v1189
        %v1318 = vsub.f32 %v1142, %v1190
        %v1319 = vsub.f32 %v1143, %v1191
        %v1320 = vadd.f32 %v1288, 1e-05
        %v1321 = vadd.f32 %v1289, 1e-05
        %v1322 = vadd.f32 %v1290, 1e-05
        %v1323 = vadd.f32 %v1291, 1e-05
        %v1324 = vadd.f32 %v1292, 1e-05
        %v1325 = vadd.f32 %v1293, 1e-05
        %v1326 = vadd.f32 %v1294, 1e-05
        %v1327 = vadd.f32 %v1295, 1e-05
        %v1328 = vadd.f32 %v1296, 1e-05
        %v1329 = vadd.f32 %v1297, 1e-05
        %v1330 = vadd.f32 %v1298, 1e-05
        %v1331 = vadd.f32 %v1299, 1e-05
        %v1332 = vadd.f32 %v1300, 1e-05
        %v1333 = vadd.f32 %v1301, 1e-05
        %v1334 = vadd.f32 %v1302, 1e-05
        %v1335 = vadd.f32 %v1303, 1e-05
        %v1336 = vrsqrt.pop %v1320
        %v1337 = vrsqrt.pop %v1321
        %v1338 = vrsqrt.pop %v1322
        %v1339 = vrsqrt.pop %v1323
        %v1340 = vrsqrt.pop %v1324
        %v1341 = vrsqrt.pop %v1325
        %v1342 = vrsqrt.pop %v1326
        %v1343 = vrsqrt.pop %v1327
        %v1344 = vrsqrt.pop %v1328
        %v1345 = vrsqrt.pop %v1329
        %v1346 = vrsqrt.pop %v1330
        %v1347 = vrsqrt.pop %v1331
        %v1348 = vrsqrt.pop %v1332
        %v1349 = vrsqrt.pop %v1333
        %v1350 = vrsqrt.pop %v1334
        %v1351 = vrsqrt.pop %v1335
        %v1352 = vmul.f32 %v1304, %v1336
        %v1353 = vmul.f32 %v1305, %v1337
        %v1354 = vmul.f32 %v1306, %v1338
        %v1355 = vmul.f32 %v1307, %v1339
        %v1356 = vmul.f32 %v1308, %v1340
        %v1357 = vmul.f32 %v1309, %v1341
        %v1358 = vmul.f32 %v1310, %v1342
        %v1359 = vmul.f32 %v1311, %v1343
        %v1360 = vmul.f32 %v1312, %v1344
        %v1361 = vmul.f32 %v1313, %v1345
        %v1362 = vmul.f32 %v1314, %v1346
        %v1363 = vmul.f32 %v1315, %v1347
        %v1364 = vmul.f32 %v1316, %v1348
        %v1365 = vmul.f32 %v1317, %v1349
        %v1366 = vmul.f32 %v1318, %v1350
        %v1367 = vmul.f32 %v1319, %v1351
        %v1368 = vlaneseq
        %v1369 = vshrl.u32 %v1368, 7
        %v1370 = vsub.s32 0, %v1369
        %v1371 = vrot.slane %v473, %v1370
        %v1372 = vmul.f32 %v1352, %v1371
        %v1373 = vmul.f32 %v1353, %v1371
        %v1374 = vmul.f32 %v1354, %v1371
        %v1375 = vmul.f32 %v1355, %v1371
        %v1376 = vmul.f32 %v1356, %v1371
        %v1377 = vmul.f32 %v1357, %v1371
        %v1378 = vmul.f32 %v1358, %v1371
        %v1379 = vmul.f32 %v1359, %v1371
        %v1380 = vmul.f32 %v1360, %v1371
        %v1381 = vmul.f32 %v1361, %v1371
        %v1382 = vmul.f32 %v1362, %v1371
        %v1383 = vmul.f32 %v1363, %v1371
        %v1384 = vmul.f32 %v1364, %v1371
        %v1385 = vmul.f32 %v1365, %v1371
        %v1386 = vmul.f32 %v1366, %v1371
        %v1387 = vmul.f32 %v1367, %v1371
        %v1388 = vlaneseq
        %v1389 = vshrl.u32 %v1388, 7
        %v1390 = vsub.s32 0, %v1389
        %v1391 = vrot.slane %v474, %v1390
        %v1392 = vadd.f32 %v1372, %v1391
        %v1393 = vadd.f32 %v1373, %v1391
        %v1394 = vadd.f32 %v1374, %v1391
        %v1395 = vadd.f32 %v1375, %v1391
        %v1396 = vadd.f32 %v1376, %v1391
        %v1397 = vadd.f32 %v1377, %v1391
        %v1398 = vadd.f32 %v1378, %v1391
        %v1399 = vadd.f32 %v1379, %v1391
        %v1400 = vadd.f32 %v1380, %v1391
        %v1401 = vadd.f32 %v1381, %v1391
        %v1402 = vadd.f32 %v1382, %v1391
        %v1403 = vadd.f32 %v1383, %v1391
        %v1404 = vadd.f32 %v1384, %v1391
        %v1405 = vadd.f32 %v1385, %v1391
        %v1406 = vadd.f32 %v1386, %v1391
        %v1407 = vadd.f32 %v1387, %v1391
        %v1408 = vmax.f32 %v1392, 0.0
        %v1409 = vmax.f32 %v1393, 0.0
        %v1410 = vmax.f32 %v1394, 0.0
        %v1411 = vmax.f32 %v1395, 0.0
        %v1412 = vmax.f32 %v1396, 0.0
        %v1413 = vmax.f32 %v1397, 0.0
        %v1414 = vmax.f32 %v1398, 0.0
        %v1415 = vmax.f32 %v1399, 0.0
        %v1416 = vmax.f32 %v1400, 0.0
        %v1417 = vmax.f32 %v1401, 0.0
        %v1418 = vmax.f32 %v1402, 0.0
        %v1419 = vmax.f32 %v1403, 0.0
        %v1420 = vmax.f32 %v1404, 0.0
        %v1421 = vmax.f32 %v1405, 0.0
        %v1422 = vmax.f32 %v1406, 0.0
        %v1423 = vmax.f32 %v1407, 0.0
        %1424 = vmatprep.subr.mxu0 0.0
        %1425 = vmatpush1.msra.mxu0 %v510
        %1426 = vmatprep.subr.mxu0 0.0
        %1427 = vmatpush1.msra.mxu0 %v509
        %1428 = vmatprep.subr.mxu0 0.0
        %1429 = vmatpush1.msra.mxu0 %v508
        %1430 = vmatprep.subr.mxu0 0.0
        %1431 = vmatpush1.msra.mxu0 %v507
        %1432 = vmatprep.subr.mxu0 0.0
        %1433 = vmatpush1.msra.mxu0 %v506
        %1434 = vmatprep.subr.mxu0 0.0
        %1435 = vmatpush1.msra.mxu0 %v505
        %1436 = vmatprep.subr.mxu0 0.0
        %1437 = vmatpush1.msra.mxu0 %v504
        %1438 = vmatprep.subr.mxu0 0.0
        %1439 = vmatpush1.msra.mxu0 %v503
        %1440 = vmatprep.subr.mxu0 0.0
        %1441 = vmatpush1.msra.mxu0 %v502
        %1442 = vmatprep.subr.mxu0 0.0
        %1443 = vmatpush1.msra.mxu0 %v501
        %1444 = vmatprep.subr.mxu0 0.0
        %1445 = vmatpush1.msra.mxu0 %v500
        %1446 = vmatprep.subr.mxu0 0.0
        %1447 = vmatpush1.msra.mxu0 %v499
        %1448 = vmatprep.subr.mxu0 0.0
        %1449 = vmatpush1.msra.mxu0 %v498
        %1450 = vmatprep.subr.mxu0 0.0
        %1451 = vmatpush1.msra.mxu0 %v497
        %1452 = vmatprep.subr.mxu0 0.0
        %1453 = vmatpush1.msra.mxu0 %v496
        %1454 = vmatprep.subr.mxu0 0.0
        %1455 = vmatpush1.msra.mxu0 %v495
        %1456 = vmatprep.subr.mxu0 0.0
        %1457 = vmatpush2.msra.mxu0 0.0
        %1458 = vmatprep.subr.mxu0 0.0
        %1459 = vmatpush2.msra.mxu0 0.0
        %1460 = vmatprep.subr.mxu0 0.0
        %1461 = vmatpush2.msra.mxu0 0.0
        %1462 = vmatprep.subr.mxu0 0.0
        %1463 = vmatpush2.msra.mxu0 0.0
        %1464 = vmatprep.subr.mxu0 0.0
        %1465 = vmatpush2.msra.mxu0 0.0
        %1466 = vmatprep.subr.mxu0 0.0
        %1467 = vmatpush2.msra.mxu0 0.0
        %1468 = vmatprep.subr.mxu0 0.0
        %1469 = vmatpush2.msra.mxu0 0.0
        %1470 = vmatprep.subr.mxu0 0.0
        %1471 = vmatpush2.msra.mxu0 0.0
        %1472 = vmatprep.subr.mxu0 0.0
        %1473 = vmatpush2.msra.mxu0 0.0
        %1474 = vmatprep.subr.mxu0 0.0
        %1475 = vmatpush2.msra.mxu0 0.0
        %1476 = vmatprep.subr.mxu0 0.0
        %1477 = vmatpush2.msra.mxu0 0.0
        %1478 = vmatprep.subr.mxu0 0.0
        %1479 = vmatpush2.msra.mxu0 0.0
        %1480 = vmatprep.subr.mxu0 0.0
        %1481 = vmatpush2.msra.mxu0 0.0
        %1482 = vmatprep.subr.mxu0 0.0
        %1483 = vmatpush2.msra.mxu0 0.0
        %1484 = vmatprep.subr.mxu0 0.0
        %1485 = vmatpush2.msra.mxu0 0.0
        %1486 = vmatprep.subr.mxu0 0.0
        %1487 = vmatpush2.msra.mxu0 0.0
        %1488 = vmatprep.mubr.f32.mxu0 0.0
        %1489 = vmatmul.mubr.f32.gmra.mxu0 %v1408
        %v1490 = vpop.f32.mrf.mxu0
        %v1491 = vadd.f32 0.0, %v1490
        %v1492 = vpop.f32.mrf.mxu0
        %1493 = vmatprep.mubr.f32.mxu0 0.0
        %1494 = vmatmul.mubr.f32.gmra.mxu0 %v1409
        %v1495 = vpop.f32.mrf.mxu0
        %v1496 = vadd.f32 0.0, %v1495
        %v1497 = vpop.f32.mrf.mxu0
        %1498 = vmatprep.mubr.f32.mxu0 0.0
        %1499 = vmatmul.mubr.f32.gmra.mxu0 %v1410
        %v1500 = vpop.f32.mrf.mxu0
        %v1501 = vadd.f32 0.0, %v1500
        %v1502 = vpop.f32.mrf.mxu0
        %1503 = vmatprep.mubr.f32.mxu0 0.0
        %1504 = vmatmul.mubr.f32.gmra.mxu0 %v1411
        %v1505 = vpop.f32.mrf.mxu0
        %v1506 = vadd.f32 0.0, %v1505
        %v1507 = vpop.f32.mrf.mxu0
        %1508 = vmatprep.mubr.f32.mxu0 0.0
        %1509 = vmatmul.mubr.f32.gmra.mxu0 %v1412
        %v1510 = vpop.f32.mrf.mxu0
        %v1511 = vadd.f32 0.0, %v1510
        %v1512 = vpop.f32.mrf.mxu0
        %1513 = vmatprep.mubr.f32.mxu0 0.0
        %1514 = vmatmul.mubr.f32.gmra.mxu0 %v1413
        %v1515 = vpop.f32.mrf.mxu0
        %v1516 = vadd.f32 0.0, %v1515
        %v1517 = vpop.f32.mrf.mxu0
        %1518 = vmatprep.mubr.f32.mxu0 0.0
        %1519 = vmatmul.mubr.f32.gmra.mxu0 %v1414
        %v1520 = vpop.f32.mrf.mxu0
        %v1521 = vadd.f32 0.0, %v1520
        %v1522 = vpop.f32.mrf.mxu0
        %1523 = vmatprep.mubr.f32.mxu0 0.0
        %1524 = vmatmul.mubr.f32.gmra.mxu0 %v1415
        %v1525 = vpop.f32.mrf.mxu0
        %v1526 = vadd.f32 0.0, %v1525
        %v1527 = vpop.f32.mrf.mxu0
        %1528 = vmatprep.mubr.f32.mxu0 0.0
        %1529 = vmatmul.mubr.f32.gmra.mxu0 %v1416
        %v1530 = vpop.f32.mrf.mxu0
        %v1531 = vadd.f32 0.0, %v1530
        %v1532 = vpop.f32.mrf.mxu0
        %1533 = vmatprep.mubr.f32.mxu0 0.0
        %1534 = vmatmul.mubr.f32.gmra.mxu0 %v1417
        %v1535 = vpop.f32.mrf.mxu0
        %v1536 = vadd.f32 0.0, %v1535
        %v1537 = vpop.f32.mrf.mxu0
        %1538 = vmatprep.mubr.f32.mxu0 0.0
        %1539 = vmatmul.mubr.f32.gmra.mxu0 %v1418
        %v1540 = vpop.f32.mrf.mxu0
        %v1541 = vadd.f32 0.0, %v1540
        %v1542 = vpop.f32.mrf.mxu0
        %1543 = vmatprep.mubr.f32.mxu0 0.0
        %1544 = vmatmul.mubr.f32.gmra.mxu0 %v1419
        %v1545 = vpop.f32.mrf.mxu0
        %v1546 = vadd.f32 0.0, %v1545
        %v1547 = vpop.f32.mrf.mxu0
        %1548 = vmatprep.mubr.f32.mxu0 0.0
        %1549 = vmatmul.mubr.f32.gmra.mxu0 %v1420
        %v1550 = vpop.f32.mrf.mxu0
        %v1551 = vadd.f32 0.0, %v1550
        %v1552 = vpop.f32.mrf.mxu0
        %1553 = vmatprep.mubr.f32.mxu0 0.0
        %1554 = vmatmul.mubr.f32.gmra.mxu0 %v1421
        %v1555 = vpop.f32.mrf.mxu0
        %v1556 = vadd.f32 0.0, %v1555
        %v1557 = vpop.f32.mrf.mxu0
        %1558 = vmatprep.mubr.f32.mxu0 0.0
        %1559 = vmatmul.mubr.f32.gmra.mxu0 %v1422
        %v1560 = vpop.f32.mrf.mxu0
        %v1561 = vadd.f32 0.0, %v1560
        %v1562 = vpop.f32.mrf.mxu0
        %1563 = vmatprep.mubr.f32.mxu0 0.0
        %1564 = vmatmul.mubr.f32.gmra.mxu0 %v1423
        %v1565 = vpop.f32.mrf.mxu0
        %v1566 = vadd.f32 0.0, %v1565
        %v1567 = vpop.f32.mrf.mxu0
        %1568 = vdwg.mxu0
        %v1569 = vrot.slane %v1491, 7
        %v1570 = vrot.slane %v1496, 7
        %v1571 = vrot.slane %v1501, 7
        %v1572 = vrot.slane %v1506, 7
        %v1573 = vrot.slane %v1511, 7
        %v1574 = vrot.slane %v1516, 7
        %v1575 = vrot.slane %v1521, 7
        %v1576 = vrot.slane %v1526, 7
        %v1577 = vrot.slane %v1531, 7
        %v1578 = vrot.slane %v1536, 7
        %v1579 = vrot.slane %v1541, 7
        %v1580 = vrot.slane %v1546, 7
        %v1581 = vrot.slane %v1551, 7
        %v1582 = vrot.slane %v1556, 7
        %v1583 = vrot.slane %v1561, 7
        %v1584 = vrot.slane %v1566, 7
        %v1585 = vsel %vm672, %v1583, %v1584
        %v1586 = vsel %vm672, %v1582, %v1583
        %v1587 = vsel %vm672, %v1581, %v1582
        %v1588 = vsel %vm672, %v1580, %v1581
        %v1589 = vsel %vm672, %v1579, %v1580
        %v1590 = vsel %vm672, %v1578, %v1579
        %v1591 = vsel %vm672, %v1577, %v1578
        %v1592 = vsel %vm672, %v1576, %v1577
        %v1593 = vsel %vm672, %v1575, %v1576
        %v1594 = vsel %vm672, %v1574, %v1575
        %v1595 = vsel %vm672, %v1573, %v1574
        %v1596 = vsel %vm672, %v1572, %v1573
        %v1597 = vsel %vm672, %v1571, %v1572
        %v1598 = vsel %vm672, %v1570, %v1571
        %v1599 = vsel %vm672, %v1569, %v1570
        %v1600 = vsel %vm672, %v1584, %v1569
        %v1601 = vmul.f32 %v1600, %v296
        %v1602 = vmul.f32 %v1599, %v297
        %v1603 = vmul.f32 %v1598, %v298
        %v1604 = vmul.f32 %v1597, %v299
        %v1605 = vmul.f32 %v1596, %v300
        %v1606 = vmul.f32 %v1595, %v301
        %v1607 = vmul.f32 %v1594, %v302
        %v1608 = vmul.f32 %v1593, %v303
        %v1609 = vmul.f32 %v1592, %v304
        %v1610 = vmul.f32 %v1591, %v305
        %v1611 = vmul.f32 %v1590, %v306
        %v1612 = vmul.f32 %v1589, %v307
        %v1613 = vmul.f32 %v1588, %v308
        %v1614 = vmul.f32 %v1587, %v309
        %v1615 = vmul.f32 %v1586, %v310
        %v1616 = vmul.f32 %v1585, %v311
        %1617 = vmatprep.subr.mxu0 0.0
        %1618 = vmatpush1.msra.mxu0 %v720
        %1619 = vmatprep.subr.mxu0 0.0
        %1620 = vmatpush1.msra.mxu0 %v719
        %1621 = vmatprep.subr.mxu0 0.0
        %1622 = vmatpush1.msra.mxu0 %v718
        %1623 = vmatprep.subr.mxu0 0.0
        %1624 = vmatpush1.msra.mxu0 %v717
        %1625 = vmatprep.subr.mxu0 0.0
        %1626 = vmatpush1.msra.mxu0 %v716
        %1627 = vmatprep.subr.mxu0 0.0
        %1628 = vmatpush1.msra.mxu0 %v715
        %1629 = vmatprep.subr.mxu0 0.0
        %1630 = vmatpush1.msra.mxu0 %v714
        %1631 = vmatprep.subr.mxu0 0.0
        %1632 = vmatpush1.msra.mxu0 %v713
        %1633 = vmatprep.subr.mxu0 0.0
        %1634 = vmatpush1.msra.mxu0 %v712
        %1635 = vmatprep.subr.mxu0 0.0
        %1636 = vmatpush1.msra.mxu0 %v711
        %1637 = vmatprep.subr.mxu0 0.0
        %1638 = vmatpush1.msra.mxu0 %v710
        %1639 = vmatprep.subr.mxu0 0.0
        %1640 = vmatpush1.msra.mxu0 %v709
        %1641 = vmatprep.subr.mxu0 0.0
        %1642 = vmatpush1.msra.mxu0 %v708
        %1643 = vmatprep.subr.mxu0 0.0
        %1644 = vmatpush1.msra.mxu0 %v707
        %1645 = vmatprep.subr.mxu0 0.0
        %1646 = vmatpush1.msra.mxu0 %v706
        %1647 = vmatprep.subr.mxu0 0.0
        %1648 = vmatpush1.msra.mxu0 %v705
        %1649 = vmatprep.subr.mxu0 0.0
        %1650 = vmatpush2.msra.mxu0 0.0
        %1651 = vmatprep.subr.mxu0 0.0
        %1652 = vmatpush2.msra.mxu0 0.0
        %1653 = vmatprep.subr.mxu0 0.0
        %1654 = vmatpush2.msra.mxu0 0.0
        %1655 = vmatprep.subr.mxu0 0.0
        %1656 = vmatpush2.msra.mxu0 0.0
        %1657 = vmatprep.subr.mxu0 0.0
        %1658 = vmatpush2.msra.mxu0 0.0
        %1659 = vmatprep.subr.mxu0 0.0
        %1660 = vmatpush2.msra.mxu0 0.0
        %1661 = vmatprep.subr.mxu0 0.0
        %1662 = vmatpush2.msra.mxu0 0.0
        %1663 = vmatprep.subr.mxu0 0.0
        %1664 = vmatpush2.msra.mxu0 0.0
        %1665 = vmatprep.subr.mxu0 0.0
        %1666 = vmatpush2.msra.mxu0 0.0
        %1667 = vmatprep.subr.mxu0 0.0
        %1668 = vmatpush2.msra.mxu0 0.0
        %1669 = vmatprep.subr.mxu0 0.0
        %1670 = vmatpush2.msra.mxu0 0.0
        %1671 = vmatprep.subr.mxu0 0.0
        %1672 = vmatpush2.msra.mxu0 0.0
        %1673 = vmatprep.subr.mxu0 0.0
        %1674 = vmatpush2.msra.mxu0 0.0
        %1675 = vmatprep.subr.mxu0 0.0
        %1676 = vmatpush2.msra.mxu0 0.0
        %1677 = vmatprep.subr.mxu0 0.0
        %1678 = vmatpush2.msra.mxu0 0.0
        %1679 = vmatprep.subr.mxu0 0.0
        %1680 = vmatpush2.msra.mxu0 0.0
        %1681 = vmatprep.mubr.f32.mxu0 0.0
        %1682 = vmatmul.mubr.f32.gmra.mxu0 %v1408
        %v1683 = vpop.f32.mrf.mxu0
        %v1684 = vadd.f32 0.0, %v1683
        %v1685 = vpop.f32.mrf.mxu0
        %1686 = vmatprep.mubr.f32.mxu0 0.0
        %1687 = vmatmul.mubr.f32.gmra.mxu0 %v1409
        %v1688 = vpop.f32.mrf.mxu0
        %v1689 = vadd.f32 0.0, %v1688
        %v1690 = vpop.f32.mrf.mxu0
        %1691 = vmatprep.mubr.f32.mxu0 0.0
        %1692 = vmatmul.mubr.f32.gmra.mxu0 %v1410
        %v1693 = vpop.f32.mrf.mxu0
        %v1694 = vadd.f32 0.0, %v1693
        %v1695 = vpop.f32.mrf.mxu0
        %1696 = vmatprep.mubr.f32.mxu0 0.0
        %1697 = vmatmul.mubr.f32.gmra.mxu0 %v1411
        %v1698 = vpop.f32.mrf.mxu0
        %v1699 = vadd.f32 0.0, %v1698
        %v1700 = vpop.f32.mrf.mxu0
        %1701 = vmatprep.mubr.f32.mxu0 0.0
        %1702 = vmatmul.mubr.f32.gmra.mxu0 %v1412
        %v1703 = vpop.f32.mrf.mxu0
        %v1704 = vadd.f32 0.0, %v1703
        %v1705 = vpop.f32.mrf.mxu0
        %1706 = vmatprep.mubr.f32.mxu0 0.0
        %1707 = vmatmul.mubr.f32.gmra.mxu0 %v1413
        %v1708 = vpop.f32.mrf.mxu0
        %v1709 = vadd.f32 0.0, %v1708
        %v1710 = vpop.f32.mrf.mxu0
        %1711 = vmatprep.mubr.f32.mxu0 0.0
        %1712 = vmatmul.mubr.f32.gmra.mxu0 %v1414
        %v1713 = vpop.f32.mrf.mxu0
        %v1714 = vadd.f32 0.0, %v1713
        %v1715 = vpop.f32.mrf.mxu0
        %1716 = vmatprep.mubr.f32.mxu0 0.0
        %1717 = vmatmul.mubr.f32.gmra.mxu0 %v1415
        %v1718 = vpop.f32.mrf.mxu0
        %v1719 = vadd.f32 0.0, %v1718
        %v1720 = vpop.f32.mrf.mxu0
        %1721 = vmatprep.mubr.f32.mxu0 0.0
        %1722 = vmatmul.mubr.f32.gmra.mxu0 %v1416
        %v1723 = vpop.f32.mrf.mxu0
        %v1724 = vadd.f32 0.0, %v1723
        %v1725 = vpop.f32.mrf.mxu0
        %1726 = vmatprep.mubr.f32.mxu0 0.0
        %1727 = vmatmul.mubr.f32.gmra.mxu0 %v1417
        %v1728 = vpop.f32.mrf.mxu0
        %v1729 = vadd.f32 0.0, %v1728
        %v1730 = vpop.f32.mrf.mxu0
        %1731 = vmatprep.mubr.f32.mxu0 0.0
        %1732 = vmatmul.mubr.f32.gmra.mxu0 %v1418
        %v1733 = vpop.f32.mrf.mxu0
        %v1734 = vadd.f32 0.0, %v1733
        %v1735 = vpop.f32.mrf.mxu0
        %1736 = vmatprep.mubr.f32.mxu0 0.0
        %1737 = vmatmul.mubr.f32.gmra.mxu0 %v1419
        %v1738 = vpop.f32.mrf.mxu0
        %v1739 = vadd.f32 0.0, %v1738
        %v1740 = vpop.f32.mrf.mxu0
        %1741 = vmatprep.mubr.f32.mxu0 0.0
        %1742 = vmatmul.mubr.f32.gmra.mxu0 %v1420
        %v1743 = vpop.f32.mrf.mxu0
        %v1744 = vadd.f32 0.0, %v1743
        %v1745 = vpop.f32.mrf.mxu0
        %1746 = vmatprep.mubr.f32.mxu0 0.0
        %1747 = vmatmul.mubr.f32.gmra.mxu0 %v1421
        %v1748 = vpop.f32.mrf.mxu0
        %v1749 = vadd.f32 0.0, %v1748
        %v1750 = vpop.f32.mrf.mxu0
        %1751 = vmatprep.mubr.f32.mxu0 0.0
        %1752 = vmatmul.mubr.f32.gmra.mxu0 %v1422
        %v1753 = vpop.f32.mrf.mxu0
        %v1754 = vadd.f32 0.0, %v1753
        %v1755 = vpop.f32.mrf.mxu0
        %1756 = vmatprep.mubr.f32.mxu0 0.0
        %1757 = vmatmul.mubr.f32.gmra.mxu0 %v1423
        %v1758 = vpop.f32.mrf.mxu0
        %v1759 = vadd.f32 0.0, %v1758
        %v1760 = vpop.f32.mrf.mxu0
        %1761 = vdwg.mxu0
        %v1762 = vmul.f32 %v1684, %v376
        %v1763 = vmul.f32 %v1689, %v377
        %v1764 = vmul.f32 %v1694, %v378
        %v1765 = vmul.f32 %v1699, %v379
        %v1766 = vmul.f32 %v1704, %v380
        %v1767 = vmul.f32 %v1709, %v381
        %v1768 = vmul.f32 %v1714, %v382
        %v1769 = vmul.f32 %v1719, %v383
        %v1770 = vmul.f32 %v1724, %v384
        %v1771 = vmul.f32 %v1729, %v385
        %v1772 = vmul.f32 %v1734, %v386
        %v1773 = vmul.f32 %v1739, %v387
        %v1774 = vmul.f32 %v1744, %v388
        %v1775 = vmul.f32 %v1749, %v389
        %v1776 = vmul.f32 %v1754, %v390
        %v1777 = vmul.f32 %v1759, %v391
        %v1778 = vadd.f32 %v1601, %v1762
        %v1779 = vadd.f32 %v1602, %v1763
        %v1780 = vadd.f32 %v1603, %v1764
        %v1781 = vadd.f32 %v1604, %v1765
        %v1782 = vadd.f32 %v1605, %v1766
        %v1783 = vadd.f32 %v1606, %v1767
        %v1784 = vadd.f32 %v1607, %v1768
        %v1785 = vadd.f32 %v1608, %v1769
        %v1786 = vadd.f32 %v1609, %v1770
        %v1787 = vadd.f32 %v1610, %v1771
        %v1788 = vadd.f32 %v1611, %v1772
        %v1789 = vadd.f32 %v1612, %v1773
        %v1790 = vadd.f32 %v1613, %v1774
        %v1791 = vadd.f32 %v1614, %v1775
        %v1792 = vadd.f32 %v1615, %v1776
        %v1793 = vadd.f32 %v1616, %v1777
        %1794 = vmatprep.subr.mxu0 0.0
        %1795 = vmatpush1.msra.mxu0 %v913
        %1796 = vmatprep.subr.mxu0 0.0
        %1797 = vmatpush1.msra.mxu0 %v912
        %1798 = vmatprep.subr.mxu0 0.0
        %1799 = vmatpush1.msra.mxu0 %v911
        %1800 = vmatprep.subr.mxu0 0.0
        %1801 = vmatpush1.msra.mxu0 %v910
        %1802 = vmatprep.subr.mxu0 0.0
        %1803 = vmatpush1.msra.mxu0 %v909
        %1804 = vmatprep.subr.mxu0 0.0
        %1805 = vmatpush1.msra.mxu0 %v908
        %1806 = vmatprep.subr.mxu0 0.0
        %1807 = vmatpush1.msra.mxu0 %v907
        %1808 = vmatprep.subr.mxu0 0.0
        %1809 = vmatpush1.msra.mxu0 %v906
        %1810 = vmatprep.subr.mxu0 0.0
        %1811 = vmatpush1.msra.mxu0 %v905
        %1812 = vmatprep.subr.mxu0 0.0
        %1813 = vmatpush1.msra.mxu0 %v904
        %1814 = vmatprep.subr.mxu0 0.0
        %1815 = vmatpush1.msra.mxu0 %v903
        %1816 = vmatprep.subr.mxu0 0.0
        %1817 = vmatpush1.msra.mxu0 %v902
        %1818 = vmatprep.subr.mxu0 0.0
        %1819 = vmatpush1.msra.mxu0 %v901
        %1820 = vmatprep.subr.mxu0 0.0
        %1821 = vmatpush1.msra.mxu0 %v900
        %1822 = vmatprep.subr.mxu0 0.0
        %1823 = vmatpush1.msra.mxu0 %v899
        %1824 = vmatprep.subr.mxu0 0.0
        %1825 = vmatpush1.msra.mxu0 %v898
        %1826 = vmatprep.subr.mxu0 0.0
        %1827 = vmatpush2.msra.mxu0 0.0
        %1828 = vmatprep.subr.mxu0 0.0
        %1829 = vmatpush2.msra.mxu0 0.0
        %1830 = vmatprep.subr.mxu0 0.0
        %1831 = vmatpush2.msra.mxu0 0.0
        %1832 = vmatprep.subr.mxu0 0.0
        %1833 = vmatpush2.msra.mxu0 0.0
        %1834 = vmatprep.subr.mxu0 0.0
        %1835 = vmatpush2.msra.mxu0 0.0
        %1836 = vmatprep.subr.mxu0 0.0
        %1837 = vmatpush2.msra.mxu0 0.0
        %1838 = vmatprep.subr.mxu0 0.0
        %1839 = vmatpush2.msra.mxu0 0.0
        %1840 = vmatprep.subr.mxu0 0.0
        %1841 = vmatpush2.msra.mxu0 0.0
        %1842 = vmatprep.subr.mxu0 0.0
        %1843 = vmatpush2.msra.mxu0 0.0
        %1844 = vmatprep.subr.mxu0 0.0
        %1845 = vmatpush2.msra.mxu0 0.0
        %1846 = vmatprep.subr.mxu0 0.0
        %1847 = vmatpush2.msra.mxu0 0.0
        %1848 = vmatprep.subr.mxu0 0.0
        %1849 = vmatpush2.msra.mxu0 0.0
        %1850 = vmatprep.subr.mxu0 0.0
        %1851 = vmatpush2.msra.mxu0 0.0
        %1852 = vmatprep.subr.mxu0 0.0
        %1853 = vmatpush2.msra.mxu0 0.0
        %1854 = vmatprep.subr.mxu0 0.0
        %1855 = vmatpush2.msra.mxu0 0.0
        %1856 = vmatprep.subr.mxu0 0.0
        %1857 = vmatpush2.msra.mxu0 0.0
        %1858 = vmatprep.mubr.f32.mxu0 0.0
        %1859 = vmatmul.mubr.f32.gmra.mxu0 %v1408
        %v1860 = vpop.f32.mrf.mxu0
        %v1861 = vadd.f32 0.0, %v1860
        %v1862 = vpop.f32.mrf.mxu0
        %1863 = vmatprep.mubr.f32.mxu0 0.0
        %1864 = vmatmul.mubr.f32.gmra.mxu0 %v1409
        %v1865 = vpop.f32.mrf.mxu0
        %v1866 = vadd.f32 0.0, %v1865
        %v1867 = vpop.f32.mrf.mxu0
        %1868 = vmatprep.mubr.f32.mxu0 0.0
        %1869 = vmatmul.mubr.f32.gmra.mxu0 %v1410
        %v1870 = vpop.f32.mrf.mxu0
        %v1871 = vadd.f32 0.0, %v1870
        %v1872 = vpop.f32.mrf.mxu0
        %1873 = vmatprep.mubr.f32.mxu0 0.0
        %1874 = vmatmul.mubr.f32.gmra.mxu0 %v1411
        %v1875 = vpop.f32.mrf.mxu0
        %v1876 = vadd.f32 0.0, %v1875
        %v1877 = vpop.f32.mrf.mxu0
        %1878 = vmatprep.mubr.f32.mxu0 0.0
        %1879 = vmatmul.mubr.f32.gmra.mxu0 %v1412
        %v1880 = vpop.f32.mrf.mxu0
        %v1881 = vadd.f32 0.0, %v1880
        %v1882 = vpop.f32.mrf.mxu0
        %1883 = vmatprep.mubr.f32.mxu0 0.0
        %1884 = vmatmul.mubr.f32.gmra.mxu0 %v1413
        %v1885 = vpop.f32.mrf.mxu0
        %v1886 = vadd.f32 0.0, %v1885
        %v1887 = vpop.f32.mrf.mxu0
        %1888 = vmatprep.mubr.f32.mxu0 0.0
        %1889 = vmatmul.mubr.f32.gmra.mxu0 %v1414
        %v1890 = vpop.f32.mrf.mxu0
        %v1891 = vadd.f32 0.0, %v1890
        %v1892 = vpop.f32.mrf.mxu0
        %1893 = vmatprep.mubr.f32.mxu0 0.0
        %1894 = vmatmul.mubr.f32.gmra.mxu0 %v1415
        %v1895 = vpop.f32.mrf.mxu0
        %v1896 = vadd.f32 0.0, %v1895
        %v1897 = vpop.f32.mrf.mxu0
        %1898 = vmatprep.mubr.f32.mxu0 0.0
        %1899 = vmatmul.mubr.f32.gmra.mxu0 %v1416
        %v1900 = vpop.f32.mrf.mxu0
        %v1901 = vadd.f32 0.0, %v1900
        %v1902 = vpop.f32.mrf.mxu0
        %1903 = vmatprep.mubr.f32.mxu0 0.0
        %1904 = vmatmul.mubr.f32.gmra.mxu0 %v1417
        %v1905 = vpop.f32.mrf.mxu0
        %v1906 = vadd.f32 0.0, %v1905
        %v1907 = vpop.f32.mrf.mxu0
        %1908 = vmatprep.mubr.f32.mxu0 0.0
        %1909 = vmatmul.mubr.f32.gmra.mxu0 %v1418
        %v1910 = vpop.f32.mrf.mxu0
        %v1911 = vadd.f32 0.0, %v1910
        %v1912 = vpop.f32.mrf.mxu0
        %1913 = vmatprep.mubr.f32.mxu0 0.0
        %1914 = vmatmul.mubr.f32.gmra.mxu0 %v1419
        %v1915 = vpop.f32.mrf.mxu0
        %v1916 = vadd.f32 0.0, %v1915
        %v1917 = vpop.f32.mrf.mxu0
        %1918 = vmatprep.mubr.f32.mxu0 0.0
        %1919 = vmatmul.mubr.f32.gmra.mxu0 %v1420
        %v1920 = vpop.f32.mrf.mxu0
        %v1921 = vadd.f32 0.0, %v1920
        %v1922 = vpop.f32.mrf.mxu0
        %1923 = vmatprep.mubr.f32.mxu0 0.0
        %1924 = vmatmul.mubr.f32.gmra.mxu0 %v1421
        %v1925 = vpop.f32.mrf.mxu0
        %v1926 = vadd.f32 0.0, %v1925
        %v1927 = vpop.f32.mrf.mxu0
        %1928 = vmatprep.mubr.f32.mxu0 0.0
        %1929 = vmatmul.mubr.f32.gmra.mxu0 %v1422
        %v1930 = vpop.f32.mrf.mxu0
        %v1931 = vadd.f32 0.0, %v1930
        %v1932 = vpop.f32.mrf.mxu0
        %1933 = vmatprep.mubr.f32.mxu0 0.0
        %1934 = vmatmul.mubr.f32.gmra.mxu0 %v1423
        %v1935 = vpop.f32.mrf.mxu0
        %v1936 = vadd.f32 0.0, %v1935
        %v1937 = vpop.f32.mrf.mxu0
        %1938 = vdwg.mxu0
        %v1939 = vrot.slane %v1861, 1
        %v1940 = vrot.slane %v1866, 1
        %v1941 = vrot.slane %v1871, 1
        %v1942 = vrot.slane %v1876, 1
        %v1943 = vrot.slane %v1881, 1
        %v1944 = vrot.slane %v1886, 1
        %v1945 = vrot.slane %v1891, 1
        %v1946 = vrot.slane %v1896, 1
        %v1947 = vrot.slane %v1901, 1
        %v1948 = vrot.slane %v1906, 1
        %v1949 = vrot.slane %v1911, 1
        %v1950 = vrot.slane %v1916, 1
        %v1951 = vrot.slane %v1921, 1
        %v1952 = vrot.slane %v1926, 1
        %v1953 = vrot.slane %v1931, 1
        %v1954 = vrot.slane %v1936, 1
        %v1955 = vsel %vm1075, %v1953, %v1954
        %v1956 = vsel %vm1075, %v1952, %v1953
        %v1957 = vsel %vm1075, %v1951, %v1952
        %v1958 = vsel %vm1075, %v1950, %v1951
        %v1959 = vsel %vm1075, %v1949, %v1950
        %v1960 = vsel %vm1075, %v1948, %v1949
        %v1961 = vsel %vm1075, %v1947, %v1948
        %v1962 = vsel %vm1075, %v1946, %v1947
        %v1963 = vsel %vm1075, %v1945, %v1946
        %v1964 = vsel %vm1075, %v1944, %v1945
        %v1965 = vsel %vm1075, %v1943, %v1944
        %v1966 = vsel %vm1075, %v1942, %v1943
        %v1967 = vsel %vm1075, %v1941, %v1942
        %v1968 = vsel %vm1075, %v1940, %v1941
        %v1969 = vsel %vm1075, %v1939, %v1940
        %v1970 = vsel %vm1075, %v1954, %v1939
        %v1971 = vmul.f32 %v1969, %v456
        %v1972 = vmul.f32 %v1968, %v457
        %v1973 = vmul.f32 %v1967, %v458
        %v1974 = vmul.f32 %v1966, %v459
        %v1975 = vmul.f32 %v1965, %v460
        %v1976 = vmul.f32 %v1964, %v461
        %v1977 = vmul.f32 %v1963, %v462
        %v1978 = vmul.f32 %v1962, %v463
        %v1979 = vmul.f32 %v1961, %v464
        %v1980 = vmul.f32 %v1960, %v465
        %v1981 = vmul.f32 %v1959, %v466
        %v1982 = vmul.f32 %v1958, %v467
        %v1983 = vmul.f32 %v1957, %v468
        %v1984 = vmul.f32 %v1956, %v469
        %v1985 = vmul.f32 %v1955, %v470
        %v1986 = vmul.f32 %v1970, %v471
        %v1987 = vadd.f32 %v1778, %v1971
        %v1988 = vadd.f32 %v1779, %v1972
        %v1989 = vadd.f32 %v1780, %v1973
        %v1990 = vadd.f32 %v1781, %v1974
        %v1991 = vadd.f32 %v1782, %v1975
        %v1992 = vadd.f32 %v1783, %v1976
        %v1993 = vadd.f32 %v1784, %v1977
        %v1994 = vadd.f32 %v1785, %v1978
        %v1995 = vadd.f32 %v1786, %v1979
        %v1996 = vadd.f32 %v1787, %v1980
        %v1997 = vadd.f32 %v1788, %v1981
        %v1998 = vadd.f32 %v1789, %v1982
        %v1999 = vadd.f32 %v1790, %v1983
        %v2000 = vadd.f32 %v1791, %v1984
        %v2001 = vadd.f32 %v1792, %v1985
        %v2002 = vadd.f32 %v1793, %v1986
        %v2003 = vadd.f32 %v1987, %v1127
        %v2004 = vadd.f32 %v1988, %v1127
        %v2005 = vadd.f32 %v1989, %v1127
        %v2006 = vadd.f32 %v1990, %v1127
        %v2007 = vadd.f32 %v1991, %v1127
        %v2008 = vadd.f32 %v1992, %v1127
        %v2009 = vadd.f32 %v1993, %v1127
        %v2010 = vadd.f32 %v1994, %v1127
        %v2011 = vadd.f32 %v1995, %v1127
        %v2012 = vadd.f32 %v1996, %v1127
        %v2013 = vadd.f32 %v1997, %v1127
        %v2014 = vadd.f32 %v1998, %v1127
        %v2015 = vadd.f32 %v1999, %v1127
        %v2016 = vadd.f32 %v2000, %v1127
        %v2017 = vadd.f32 %v2001, %v1127
        %v2018 = vadd.f32 %v2002, %v1127
        %2019 = vadd.xlane.f32.xlu0 %v2003
        %v2020 = vpop.xlane.xlu0 %2019
        %2021 = vadd.xlane.f32.xlu0 %v2004
        %v2022 = vpop.xlane.xlu0 %2021
        %2023 = vadd.xlane.f32.xlu0 %v2005
        %v2024 = vpop.xlane.xlu0 %2023
        %2025 = vadd.xlane.f32.xlu0 %v2006
        %v2026 = vpop.xlane.xlu0 %2025
        %2027 = vadd.xlane.f32.xlu0 %v2007
        %v2028 = vpop.xlane.xlu0 %2027
        %2029 = vadd.xlane.f32.xlu0 %v2008
        %v2030 = vpop.xlane.xlu0 %2029
        %2031 = vadd.xlane.f32.xlu0 %v2009
        %v2032 = vpop.xlane.xlu0 %2031
        %2033 = vadd.xlane.f32.xlu0 %v2010
        %v2034 = vpop.xlane.xlu0 %2033
        %2035 = vadd.xlane.f32.xlu0 %v2011
        %v2036 = vpop.xlane.xlu0 %2035
        %2037 = vadd.xlane.f32.xlu0 %v2012
        %v2038 = vpop.xlane.xlu0 %2037
        %2039 = vadd.xlane.f32.xlu0 %v2013
        %v2040 = vpop.xlane.xlu0 %2039
        %2041 = vadd.xlane.f32.xlu0 %v2014
        %v2042 = vpop.xlane.xlu0 %2041
        %2043 = vadd.xlane.f32.xlu0 %v2015
        %v2044 = vpop.xlane.xlu0 %2043
        %2045 = vadd.xlane.f32.xlu0 %v2016
        %v2046 = vpop.xlane.xlu0 %2045
        %2047 = vadd.xlane.f32.xlu0 %v2017
        %v2048 = vpop.xlane.xlu0 %2047
        %2049 = vadd.xlane.f32.xlu0 %v2018
        %v2050 = vpop.xlane.xlu0 %2049
        %v2051 = vmul.f32 %v2020, 0.03125
        %v2052 = vmul.f32 %v2022, 0.03125
        %v2053 = vmul.f32 %v2024, 0.03125
        %v2054 = vmul.f32 %v2026, 0.03125
        %v2055 = vmul.f32 %v2028, 0.03125
        %v2056 = vmul.f32 %v2030, 0.03125
        %v2057 = vmul.f32 %v2032, 0.03125
        %v2058 = vmul.f32 %v2034, 0.03125
        %v2059 = vmul.f32 %v2036, 0.03125
        %v2060 = vmul.f32 %v2038, 0.03125
        %v2061 = vmul.f32 %v2040, 0.03125
        %v2062 = vmul.f32 %v2042, 0.03125
        %v2063 = vmul.f32 %v2044, 0.03125
        %v2064 = vmul.f32 %v2046, 0.03125
        %v2065 = vmul.f32 %v2048, 0.03125
        %v2066 = vmul.f32 %v2050, 0.03125
        %v2067 = vmul.f32 %v2003, %v2003
        %v2068 = vmul.f32 %v2004, %v2004
        %v2069 = vmul.f32 %v2005, %v2005
        %v2070 = vmul.f32 %v2006, %v2006
        %v2071 = vmul.f32 %v2007, %v2007
        %v2072 = vmul.f32 %v2008, %v2008
        %v2073 = vmul.f32 %v2009, %v2009
        %v2074 = vmul.f32 %v2010, %v2010
        %v2075 = vmul.f32 %v2011, %v2011
        %v2076 = vmul.f32 %v2012, %v2012
        %v2077 = vmul.f32 %v2013, %v2013
        %v2078 = vmul.f32 %v2014, %v2014
        %v2079 = vmul.f32 %v2015, %v2015
        %v2080 = vmul.f32 %v2016, %v2016
        %v2081 = vmul.f32 %v2017, %v2017
        %v2082 = vmul.f32 %v2018, %v2018
        %2083 = vadd.xlane.f32.xlu0 %v2067
        %v2084 = vpop.xlane.xlu0 %2083
        %2085 = vadd.xlane.f32.xlu0 %v2068
        %v2086 = vpop.xlane.xlu0 %2085
        %2087 = vadd.xlane.f32.xlu0 %v2069
        %v2088 = vpop.xlane.xlu0 %2087
        %2089 = vadd.xlane.f32.xlu0 %v2070
        %v2090 = vpop.xlane.xlu0 %2089
        %2091 = vadd.xlane.f32.xlu0 %v2071
        %v2092 = vpop.xlane.xlu0 %2091
        %2093 = vadd.xlane.f32.xlu0 %v2072
        %v2094 = vpop.xlane.xlu0 %2093
        %2095 = vadd.xlane.f32.xlu0 %v2073
        %v2096 = vpop.xlane.xlu0 %2095
        %2097 = vadd.xlane.f32.xlu0 %v2074
        %v2098 = vpop.xlane.xlu0 %2097
        %2099 = vadd.xlane.f32.xlu0 %v2075
        %v2100 = vpop.xlane.xlu0 %2099
        %2101 = vadd.xlane.f32.xlu0 %v2076
        %v2102 = vpop.xlane.xlu0 %2101
        %2103 = vadd.xlane.f32.xlu0 %v2077
        %v2104 = vpop.xlane.xlu0 %2103
        %2105 = vadd.xlane.f32.xlu0 %v2078
        %v2106 = vpop.xlane.xlu0 %2105
        %2107 = vadd.xlane.f32.xlu0 %v2079
        %v2108 = vpop.xlane.xlu0 %2107
        %2109 = vadd.xlane.f32.xlu0 %v2080
        %v2110 = vpop.xlane.xlu0 %2109
        %2111 = vadd.xlane.f32.xlu0 %v2081
        %v2112 = vpop.xlane.xlu0 %2111
        %2113 = vadd.xlane.f32.xlu0 %v2082
        %v2114 = vpop.xlane.xlu0 %2113
        %v2115 = vmul.f32 %v2084, 0.03125
        %v2116 = vmul.f32 %v2086, 0.03125
        %v2117 = vmul.f32 %v2088, 0.03125
        %v2118 = vmul.f32 %v2090, 0.03125
        %v2119 = vmul.f32 %v2092, 0.03125
        %v2120 = vmul.f32 %v2094, 0.03125
        %v2121 = vmul.f32 %v2096, 0.03125
        %v2122 = vmul.f32 %v2098, 0.03125
        %v2123 = vmul.f32 %v2100, 0.03125
        %v2124 = vmul.f32 %v2102, 0.03125
        %v2125 = vmul.f32 %v2104, 0.03125
        %v2126 = vmul.f32 %v2106, 0.03125
        %v2127 = vmul.f32 %v2108, 0.03125
        %v2128 = vmul.f32 %v2110, 0.03125
        %v2129 = vmul.f32 %v2112, 0.03125
        %v2130 = vmul.f32 %v2114, 0.03125
        %v2131 = vmul.f32 %v2051, %v2051
        %v2132 = vmul.f32 %v2052, %v2052
        %v2133 = vmul.f32 %v2053, %v2053
        %v2134 = vmul.f32 %v2054, %v2054
        %v2135 = vmul.f32 %v2055, %v2055
        %v2136 = vmul.f32 %v2056, %v2056
        %v2137 = vmul.f32 %v2057, %v2057
        %v2138 = vmul.f32 %v2058, %v2058
        %v2139 = vmul.f32 %v2059, %v2059
        %v2140 = vmul.f32 %v2060, %v2060
        %v2141 = vmul.f32 %v2061, %v2061
        %v2142 = vmul.f32 %v2062, %v2062
        %v2143 = vmul.f32 %v2063, %v2063
        %v2144 = vmul.f32 %v2064, %v2064
        %v2145 = vmul.f32 %v2065, %v2065
        %v2146 = vmul.f32 %v2066, %v2066
        %v2147 = vsub.f32 %v2115, %v2131
        %v2148 = vsub.f32 %v2116, %v2132
        %v2149 = vsub.f32 %v2117, %v2133
        %v2150 = vsub.f32 %v2118, %v2134
        %v2151 = vsub.f32 %v2119, %v2135
        %v2152 = vsub.f32 %v2120, %v2136
        %v2153 = vsub.f32 %v2121, %v2137
        %v2154 = vsub.f32 %v2122, %v2138
        %v2155 = vsub.f32 %v2123, %v2139
        %v2156 = vsub.f32 %v2124, %v2140
        %v2157 = vsub.f32 %v2125, %v2141
        %v2158 = vsub.f32 %v2126, %v2142
        %v2159 = vsub.f32 %v2127, %v2143
        %v2160 = vsub.f32 %v2128, %v2144
        %v2161 = vsub.f32 %v2129, %v2145
        %v2162 = vsub.f32 %v2130, %v2146
        %v2163 = vmax.f32 %v2147, 0.0
        %v2164 = vmax.f32 %v2148, 0.0
        %v2165 = vmax.f32 %v2149, 0.0
        %v2166 = vmax.f32 %v2150, 0.0
        %v2167 = vmax.f32 %v2151, 0.0
        %v2168 = vmax.f32 %v2152, 0.0
        %v2169 = vmax.f32 %v2153, 0.0
        %v2170 = vmax.f32 %v2154, 0.0
        %v2171 = vmax.f32 %v2155, 0.0
        %v2172 = vmax.f32 %v2156, 0.0
        %v2173 = vmax.f32 %v2157, 0.0
        %v2174 = vmax.f32 %v2158, 0.0
        %v2175 = vmax.f32 %v2159, 0.0
        %v2176 = vmax.f32 %v2160, 0.0
        %v2177 = vmax.f32 %v2161, 0.0
        %v2178 = vmax.f32 %v2162, 0.0
        %v2179 = vsub.f32 %v2003, %v2051
        %v2180 = vsub.f32 %v2004, %v2052
        %v2181 = vsub.f32 %v2005, %v2053
        %v2182 = vsub.f32 %v2006, %v2054
        %v2183 = vsub.f32 %v2007, %v2055
        %v2184 = vsub.f32 %v2008, %v2056
        %v2185 = vsub.f32 %v2009, %v2057
        %v2186 = vsub.f32 %v2010, %v2058
        %v2187 = vsub.f32 %v2011, %v2059
        %v2188 = vsub.f32 %v2012, %v2060
        %v2189 = vsub.f32 %v2013, %v2061
        %v2190 = vsub.f32 %v2014, %v2062
        %v2191 = vsub.f32 %v2015, %v2063
        %v2192 = vsub.f32 %v2016, %v2064
        %v2193 = vsub.f32 %v2017, %v2065
        %v2194 = vsub.f32 %v2018, %v2066
        %v2195 = vadd.f32 %v2163, 1e-05
        %v2196 = vadd.f32 %v2164, 1e-05
        %v2197 = vadd.f32 %v2165, 1e-05
        %v2198 = vadd.f32 %v2166, 1e-05
        %v2199 = vadd.f32 %v2167, 1e-05
        %v2200 = vadd.f32 %v2168, 1e-05
        %v2201 = vadd.f32 %v2169, 1e-05
        %v2202 = vadd.f32 %v2170, 1e-05
        %v2203 = vadd.f32 %v2171, 1e-05
        %v2204 = vadd.f32 %v2172, 1e-05
        %v2205 = vadd.f32 %v2173, 1e-05
        %v2206 = vadd.f32 %v2174, 1e-05
        %v2207 = vadd.f32 %v2175, 1e-05
        %v2208 = vadd.f32 %v2176, 1e-05
        %v2209 = vadd.f32 %v2177, 1e-05
        %v2210 = vadd.f32 %v2178, 1e-05
        %v2211 = vrsqrt.pop %v2195
        %v2212 = vrsqrt.pop %v2196
        %v2213 = vrsqrt.pop %v2197
        %v2214 = vrsqrt.pop %v2198
        %v2215 = vrsqrt.pop %v2199
        %v2216 = vrsqrt.pop %v2200
        %v2217 = vrsqrt.pop %v2201
        %v2218 = vrsqrt.pop %v2202
        %v2219 = vrsqrt.pop %v2203
        %v2220 = vrsqrt.pop %v2204
        %v2221 = vrsqrt.pop %v2205
        %v2222 = vrsqrt.pop %v2206
        %v2223 = vrsqrt.pop %v2207
        %v2224 = vrsqrt.pop %v2208
        %v2225 = vrsqrt.pop %v2209
        %v2226 = vrsqrt.pop %v2210
        %v2227 = vmul.f32 %v2179, %v2211
        %v2228 = vmul.f32 %v2180, %v2212
        %v2229 = vmul.f32 %v2181, %v2213
        %v2230 = vmul.f32 %v2182, %v2214
        %v2231 = vmul.f32 %v2183, %v2215
        %v2232 = vmul.f32 %v2184, %v2216
        %v2233 = vmul.f32 %v2185, %v2217
        %v2234 = vmul.f32 %v2186, %v2218
        %v2235 = vmul.f32 %v2187, %v2219
        %v2236 = vmul.f32 %v2188, %v2220
        %v2237 = vmul.f32 %v2189, %v2221
        %v2238 = vmul.f32 %v2190, %v2222
        %v2239 = vmul.f32 %v2191, %v2223
        %v2240 = vmul.f32 %v2192, %v2224
        %v2241 = vmul.f32 %v2193, %v2225
        %v2242 = vmul.f32 %v2194, %v2226
        %v2243 = vlaneseq
        %v2244 = vshrl.u32 %v2243, 7
        %v2245 = vsub.s32 0, %v2244
        %v2246 = vrot.slane %v475, %v2245
        %v2247 = vmul.f32 %v2227, %v2246
        %v2248 = vmul.f32 %v2228, %v2246
        %v2249 = vmul.f32 %v2229, %v2246
        %v2250 = vmul.f32 %v2230, %v2246
        %v2251 = vmul.f32 %v2231, %v2246
        %v2252 = vmul.f32 %v2232, %v2246
        %v2253 = vmul.f32 %v2233, %v2246
        %v2254 = vmul.f32 %v2234, %v2246
        %v2255 = vmul.f32 %v2235, %v2246
        %v2256 = vmul.f32 %v2236, %v2246
        %v2257 = vmul.f32 %v2237, %v2246
        %v2258 = vmul.f32 %v2238, %v2246
        %v2259 = vmul.f32 %v2239, %v2246
        %v2260 = vmul.f32 %v2240, %v2246
        %v2261 = vmul.f32 %v2241, %v2246
        %v2262 = vmul.f32 %v2242, %v2246
        %v2263 = vlaneseq
        %v2264 = vshrl.u32 %v2263, 7
        %v2265 = vsub.s32 0, %v2264
        %v2266 = vrot.slane %v476, %v2265
        %v2267 = vadd.f32 %v2247, %v2266
        %v2268 = vadd.f32 %v2248, %v2266
        %v2269 = vadd.f32 %v2249, %v2266
        %v2270 = vadd.f32 %v2250, %v2266
        %v2271 = vadd.f32 %v2251, %v2266
        %v2272 = vadd.f32 %v2252, %v2266
        %v2273 = vadd.f32 %v2253, %v2266
        %v2274 = vadd.f32 %v2254, %v2266
        %v2275 = vadd.f32 %v2255, %v2266
        %v2276 = vadd.f32 %v2256, %v2266
        %v2277 = vadd.f32 %v2257, %v2266
        %v2278 = vadd.f32 %v2258, %v2266
        %v2279 = vadd.f32 %v2259, %v2266
        %v2280 = vadd.f32 %v2260, %v2266
        %v2281 = vadd.f32 %v2261, %v2266
        %v2282 = vadd.f32 %v2262, %v2266
        %v2283 = vmax.f32 %v2267, 0.0
        %v2284 = vmax.f32 %v2268, 0.0
        %v2285 = vmax.f32 %v2269, 0.0
        %v2286 = vmax.f32 %v2270, 0.0
        %v2287 = vmax.f32 %v2271, 0.0
        %v2288 = vmax.f32 %v2272, 0.0
        %v2289 = vmax.f32 %v2273, 0.0
        %v2290 = vmax.f32 %v2274, 0.0
        %v2291 = vmax.f32 %v2275, 0.0
        %v2292 = vmax.f32 %v2276, 0.0
        %v2293 = vmax.f32 %v2277, 0.0
        %v2294 = vmax.f32 %v2278, 0.0
        %v2295 = vmax.f32 %v2279, 0.0
        %v2296 = vmax.f32 %v2280, 0.0
        %v2297 = vmax.f32 %v2281, 0.0
        %v2298 = vmax.f32 %v2282, 0.0
        %2300 = vset.pattern.permute.xlu0 0
        %2301 = vperm.xlu0 %2300, %v478
        %v2302 = vpop.permute.xlu0 %2301
        %2304 = vmatprep.subr.mxu0 0.0
        %2305 = vmatpush1.xpose.msra.mxu0 %v2298
        %2306 = vmatprep.subr.mxu0 0.0
        %2307 = vmatpush1.xpose.msra.mxu0 %v2297
        %2308 = vmatprep.subr.mxu0 0.0
        %2309 = vmatpush1.xpose.msra.mxu0 %v2296
        %2310 = vmatprep.subr.mxu0 0.0
        %2311 = vmatpush1.xpose.msra.mxu0 %v2295
        %2312 = vmatprep.subr.mxu0 0.0
        %2313 = vmatpush1.xpose.msra.mxu0 %v2294
        %2314 = vmatprep.subr.mxu0 0.0
        %2315 = vmatpush1.xpose.msra.mxu0 %v2293
        %2316 = vmatprep.subr.mxu0 0.0
        %2317 = vmatpush1.xpose.msra.mxu0 %v2292
        %2318 = vmatprep.subr.mxu0 0.0
        %2319 = vmatpush1.xpose.msra.mxu0 %v2291
        %2320 = vmatprep.subr.mxu0 0.0
        %2321 = vmatpush1.xpose.msra.mxu0 %v2290
        %2322 = vmatprep.subr.mxu0 0.0
        %2323 = vmatpush1.xpose.msra.mxu0 %v2289
        %2324 = vmatprep.subr.mxu0 0.0
        %2325 = vmatpush1.xpose.msra.mxu0 %v2288
        %2326 = vmatprep.subr.mxu0 0.0
        %2327 = vmatpush1.xpose.msra.mxu0 %v2287
        %2328 = vmatprep.subr.mxu0 0.0
        %2329 = vmatpush1.xpose.msra.mxu0 %v2286
        %2330 = vmatprep.subr.mxu0 0.0
        %2331 = vmatpush1.xpose.msra.mxu0 %v2285
        %2332 = vmatprep.subr.mxu0 0.0
        %2333 = vmatpush1.xpose.msra.mxu0 %v2284
        %2334 = vmatprep.subr.mxu0 0.0
        %2335 = vmatpush1.xpose.msra.mxu0 %v2283
        %2336 = vmatprep.subr.mxu0 0.0
        %2337 = vmatpush2.xpose.msra.mxu0 0.0
        %2338 = vmatprep.subr.mxu0 0.0
        %2339 = vmatpush2.xpose.msra.mxu0 0.0
        %2340 = vmatprep.subr.mxu0 0.0
        %2341 = vmatpush2.xpose.msra.mxu0 0.0
        %2342 = vmatprep.subr.mxu0 0.0
        %2343 = vmatpush2.xpose.msra.mxu0 0.0
        %2344 = vmatprep.subr.mxu0 0.0
        %2345 = vmatpush2.xpose.msra.mxu0 0.0
        %2346 = vmatprep.subr.mxu0 0.0
        %2347 = vmatpush2.xpose.msra.mxu0 0.0
        %2348 = vmatprep.subr.mxu0 0.0
        %2349 = vmatpush2.xpose.msra.mxu0 0.0
        %2350 = vmatprep.subr.mxu0 0.0
        %2351 = vmatpush2.xpose.msra.mxu0 0.0
        %2352 = vmatprep.subr.mxu0 0.0
        %2353 = vmatpush2.xpose.msra.mxu0 0.0
        %2354 = vmatprep.subr.mxu0 0.0
        %2355 = vmatpush2.xpose.msra.mxu0 0.0
        %2356 = vmatprep.subr.mxu0 0.0
        %2357 = vmatpush2.xpose.msra.mxu0 0.0
        %2358 = vmatprep.subr.mxu0 0.0
        %2359 = vmatpush2.xpose.msra.mxu0 0.0
        %2360 = vmatprep.subr.mxu0 0.0
        %2361 = vmatpush2.xpose.msra.mxu0 0.0
        %2362 = vmatprep.subr.mxu0 0.0
        %2363 = vmatpush2.xpose.msra.mxu0 0.0
        %2364 = vmatprep.subr.mxu0 0.0
        %2365 = vmatpush2.xpose.msra.mxu0 0.0
        %2366 = vmatprep.subr.mxu0 0.0
        %2367 = vmatpush2.xpose.msra.mxu0 0.0
        %2368 = vmatprep.mubr.f32.mxu0 0.0
        %2369 = vmatmul.mubr.f32.gmra.mxu0 %v477
        %v2370 = vpop.f32.mrf.mxu0
        %v2371 = vadd.f32 %v2302, %v2370
        %v2372 = vpop.f32.mrf.mxu0
        %2373 = vdwg.mxu0
        %v2374 = vmax.f32 %v2371, 0.0
        %2375 = vst [vmem:[%s214] sm:$0x1] %v2374
        %s2376 = sand.u32 %s97, 1
        %s2377 = scalar_lea.sflag [#allocation4], %s2376
        %s2378 = sand.u32 %s97, 1
        %s2379 = scalar_lea.vmem [#allocation8], %s2378
        // Predicated region
        $region45: #{tpu_custom_call.1} parent=31 // pred_check
          %p2380 = pneg %p107
        $region46: #{tpu_custom_call.1} parent=31 // pred_check_branch
          %2382 = sbr.rel (%p2380) target = $region48
        $region47: #{tpu_custom_call.1} parent=31 // pred_region
          %s2384 = ssub.s32 16, 16
          %2385 = vsyncadd %s2377, %s2384
          %s2386 = smul.addr %s21, 16
          %s2387 = scalar_lea.hbm %s3, %s2386
          %s2389 = sshll.u32 %s2379, 4
          %s2390 = int_to_ptr.vmem [resolvable:$true] %s2389
          %2392 = dma.vmem_to_hbm [thread:$0]  %s2390, 16, %s2387, %s2377
        $region48: #{tpu_custom_call.1} parent=31 // pred_fallthru
          _
      $region32: #{tpu_custom_call.1} parent=5 // pred_fallthru
        _
      %p2393 = scmp.le.s32.totalorder 2, %s16
      // Predicated region
      $region49: #{tpu_custom_call.1} parent=5 // pred_check
        %p2394 = pneg %p2393
      $region50: #{tpu_custom_call.1} parent=5 // pred_check_branch
        %2396 = sbr.rel (%p2394) target = $region52
      $region51: #{tpu_custom_call.1} parent=5 // pred_region
        %s2397 = ssub.s32 %s16, 2
        // Predicated region
        $region53: #{tpu_custom_call.1} parent=51 // pred_check
          %p2398 = pneg %p113
        $region54: #{tpu_custom_call.1} parent=51 // pred_check_branch
          %2400 = sbr.rel (%p2398) target = $region56
        $region55: #{tpu_custom_call.1} parent=51 // pred_region
          %s2401 = sand.u32 %s98, 1
          %s2402 = scalar_lea.sflag [#allocation4], %s2401
          %s2403 = sand.u32 %s98, 1
          %s2404 = scalar_lea.vmem [#allocation8], %s2403
          %2405 = dma.done %s2402, 16
        $region56: #{tpu_custom_call.1} parent=51 // pred_fallthru
          _
      $region52: #{tpu_custom_call.1} parent=5 // pred_fallthru
        _
    $region6: #{tpu_custom_call.1} parent=1 // loop_footer
      %s20 = sadd.s32 1, %s16
    $region7: #{tpu_custom_call.1} parent=1 // loop_footer_branch
      %15 = sbr.rel target = $region3
    $region8: #{tpu_custom_call.1} parent=1 // loop_exit
      _
    %2406 = vsyncpa [#allocation3], 1
    %s2407 = scalar_lea.sflag [#allocation3], 1
    %2408 = vsyncpa %s2407, 1
    %2409 = vsyncpa [#allocation6], 1
    %2410 = vsyncpa [#allocation4], 1
    %s2411 = scalar_lea.sflag [#allocation4], 1
    %2412 = vsyncpa %s2411, 1

</llo_original>
